<compile_context>
chip_gen: v7x
topology: tpu7x:2x2x1
jax: 0.10.0
libtpu: 0.0.40
codegen_flags: <defaults>
</compile_context>

<pallas_src>
import jax
import jax.numpy as jnp
from jax import lax
from jax.experimental import pallas as pl
from jax.experimental.pallas import tpu as pltpu

EPS = 1e-5   # nn.BatchNorm2d default eps
KS = 3       # kernel size (3x3, stride 1, padding 1)


@jax.jit
def basic_block(x_nchw, params):
    """x_nchw: (N, C, H, W) float32. params = (w1, b1, gamma, beta, w2, b2) in PyTorch layouts."""
    w1, b1, gamma, beta, w2, b2 = params
    # b1 is intentionally unused: a per-channel constant added before a training-mode BatchNorm
    # is removed by the mean subtraction and does not change the variance.
    del b1

    N, C, H, W = x_nchw.shape
    M = H * W                      # flattened spatial size -> lane axis (256 here)
    Cs = ((C + 7) // 8) * 8        # channels padded to a full sublane group (4 -> 8)
    cpad = Cs - C
    HALO = W + 1                   # one zero row + one zero element on each side (flat "same" pad)
    Mp = M + 2 * HALO

    # --- boundary layout work (real-sized tensors; no 128-lane channel padding) ---
    x_flat = x_nchw.astype(jnp.float32).reshape(N, C, M)
    x_flat = jnp.pad(x_flat, ((0, 0), (0, cpad), (0, 0)))        # (N, Cs, M)
    x_halo = jnp.pad(x_flat, ((0, 0), (0, 0), (HALO, HALO)))     # (N, Cs, Mp)

    def pack_w(w):  # OIHW -> (KH*KW, Cout_s, Cin_s); tap index t = kh*3 + kw
        wp = jnp.pad(w.astype(jnp.float32), ((0, cpad), (0, cpad), (0, 0), (0, 0)))
        return jnp.transpose(wp, (2, 3, 0, 1)).reshape(KS * KS, Cs, Cs)

    w1_k, w2_k = pack_w(w1), pack_w(w2)
    gamma_c = jnp.pad(gamma.astype(jnp.float32), (0, cpad)).reshape(Cs, 1)
    beta_c = jnp.pad(beta.astype(jnp.float32), (0, cpad)).reshape(Cs, 1)
    b2_c = jnp.pad(b2.astype(jnp.float32), (0, cpad)).reshape(Cs, 1)

    inv_count = 1.0 / float(N * M)  # BatchNorm population count (biased variance)

    def conv3x3(src_ref, w_ref):
        """src_ref: (Cs, Mp) haloed activations; w_ref: (9, Cs, Cs) = (tap, Cout, Cin).
        Returns (Cs, M) f32.  9 per-tap accumulated MXU dots; the flat halo supplies the
        top/bottom zero rows, a column mask kills the row-wrap of the +/-1-column taps."""
        col = lax.broadcasted_iota(jnp.int32, (Cs, M), 1) % W
        not_first_col = col >= 1          # tap looks one column to the left
        not_last_col = col <= W - 2       # tap looks one column to the right
        acc = None
        for kh in range(KS):
            for kw in range(KS):
                v = src_ref[:, pl.ds(kh * W + kw, M)]      # static-offset slice for this tap
                if kw == 0:
                    v = jnp.where(not_first_col, v, 0.0)
                elif kw == 2:
                    v = jnp.where(not_last_col, v, 0.0)
                d = jnp.dot(w_ref[kh * KS + kw], v, preferred_element_type=jnp.float32)
                acc = d if acc is None else acc + d
        return acc

    def kernel(x_ref, w1_ref, w2_ref, gamma_ref, beta_ref, b2_ref, out_ref,
               z_buf, sum_buf, sq_buf, ypad_buf):
        phase = pl.program_id(0)
        n = pl.program_id(1)

        @pl.when(phase == 0)
        def _conv1_and_batch_stats():
            @pl.when(n == 0)
            def _init():
                sum_buf[...] = jnp.zeros_like(sum_buf)
                sq_buf[...] = jnp.zeros_like(sq_buf)
            z = conv3x3(x_ref, w1_ref)                      # (Cs, M)
            z_buf[n] = z                                    # stays in VMEM; no HBM roundtrip
            sum_buf[...] += jnp.sum(z, axis=1, keepdims=True)
            sq_buf[...] += jnp.sum(z * z, axis=1, keepdims=True)

        @pl.when(phase == 1)
        def _bn_relu_conv2_residual():
            @pl.when(n == 0)
            def _zero_halo():
                ypad_buf[...] = jnp.zeros_like(ypad_buf)    # halo region stays zero afterwards
            # Fold global training-mode BN stats into a per-channel scale/shift.
            # TODO(synk): E[z^2]-E[z]^2 cancels badly for very large N*H*W; use a
            # Welford/centered accumulation if this kernel is scaled up.
            mean = sum_buf[...] * inv_count
            var = jnp.maximum(sq_buf[...] * inv_count - mean * mean, 0.0)
            scale = gamma_ref[...] * lax.rsqrt(var + EPS)
            shift = beta_ref[...] - mean * scale
            y = jnp.maximum(z_buf[n] * scale + shift, 0.0)  # BN + ReLU, (Cs, M)
            ypad_buf[:, pl.ds(HALO, M)] = y
            out = conv3x3(ypad_buf, w2_ref) + b2_ref[...] + x_ref[:, pl.ds(HALO, M)]
            out_ref[...] = out

    out = pl.pallas_call(
        kernel,
        out_shape=jax.ShapeDtypeStruct((N, Cs, M), jnp.float32),
        grid=(2, N),                                        # (phase, sample)
        in_specs=[
            pl.BlockSpec((pl.Squeezed(), Cs, Mp), lambda p, n: (n, 0, 0)),   # haloed x
            pl.BlockSpec((KS * KS, Cs, Cs), lambda p, n: (0, 0, 0)),         # w1 (resident)
            pl.BlockSpec((KS * KS, Cs, Cs), lambda p, n: (0, 0, 0)),         # w2 (resident)
            pl.BlockSpec((Cs, 1), lambda p, n: (0, 0)),                      # gamma
            pl.BlockSpec((Cs, 1), lambda p, n: (0, 0)),                      # beta
            pl.BlockSpec((Cs, 1), lambda p, n: (0, 0)),                      # b2
        ],
        # Phase 0 never writes the output; parking its block index at 0 keeps each output block's
        # visits consecutive, so every block is written back to HBM exactly once (after phase 1).
        out_specs=pl.BlockSpec((pl.Squeezed(), Cs, M), lambda p, n: (p * n, 0, 0)),
        scratch_shapes=[
            pltpu.VMEM((N, Cs, M), jnp.float32),   # z_buf: conv1 output for all samples
            pltpu.VMEM((Cs, 1), jnp.float32),      # per-channel sum
            pltpu.VMEM((Cs, 1), jnp.float32),      # per-channel sum of squares
            pltpu.VMEM((Cs, Mp), jnp.float32),     # haloed BN+ReLU activations for conv2
        ],
        compiler_params=pltpu.CompilerParams(
            # Both axes carry VMEM-scratch state (stats across samples, z across phases).
            dimension_semantics=("arbitrary", "arbitrary")),
    )(x_halo, w1_k, w2_k, gamma_c, beta_c, b2_c)

    return out[:, :C, :].reshape(N, C, H, W)


def ref_basic_block(x, params):
    """Pure-JAX reference matching PyTorch forward semantics (NCHW)."""
    w1, b1, gamma, beta, w2, b2 = params
    dn = ('NCHW', 'OIHW', 'NCHW')
    pad = [(1, 1), (1, 1)]
    y = lax.conv_general_dilated(x, w1, (1, 1), pad, dimension_numbers=dn)
    y = y + b1[None, :, None, None]
    mean = y.mean(axis=(0, 2, 3), keepdims=True)
    var = ((y - mean) ** 2).mean(axis=(0, 2, 3), keepdims=True)
    y = gamma[None, :, None, None] * (y - mean) / jnp.sqrt(var + EPS) + beta[None, :, None, None]
    y = jnp.maximum(y, 0.0)
    y = lax.conv_general_dilated(y, w2, (1, 1), pad, dimension_numbers=dn)
    y = y + b2[None, :, None, None]
    return y + x


if __name__ == "__main__":
    N, C, H, W = 2, 4, 16, 16   # inplanes = 4

    key = jax.random.PRNGKey(0)
    kx, k1, k2, k3, k4, k5, k6 = jax.random.split(key, 7)

    x = jax.random.normal(kx, (N, C, H, W), jnp.float32)
    w1 = 0.1 * jax.random.normal(k1, (C, C, KS, KS), jnp.float32)   # Conv2d weight (OIHW)
    b1 = 0.1 * jax.random.normal(k2, (C,), jnp.float32)             # Conv2d bias
    gamma = 1.0 + 0.1 * jax.random.normal(k3, (C,), jnp.float32)    # BatchNorm2d weight
    beta = 0.1 * jax.random.normal(k4, (C,), jnp.float32)           # BatchNorm2d bias
    w2 = 0.1 * jax.random.normal(k5, (C, C, KS, KS), jnp.float32)
    b2 = 0.1 * jax.random.normal(k6, (C,), jnp.float32)
    params = (w1, b1, gamma, beta, w2, b2)

    out = jax.block_until_ready(basic_block(x, params))
    ref = jax.block_until_ready(ref_basic_block(x, params))

    assert out.shape == (N, C, H, W)
    max_err = float(jnp.max(jnp.abs(out - ref)))
    assert jnp.allclose(out, ref, atol=2e-4, rtol=2e-4), max_err

    print("KERNEL_OK")
</pallas_src>

<mosaic_0001>
module attributes {stable_mosaic.version = 11 : i64} {
  func.func @kernel(%arg0: i32, %arg1: i32, %arg2: memref<1x8x290xf32, #tpu.memory_space<vmem>>, %arg3: memref<9x8x8xf32, #tpu.memory_space<vmem>>, %arg4: memref<9x8x8xf32, #tpu.memory_space<vmem>>, %arg5: memref<8x1xf32, #tpu.memory_space<vmem>>, %arg6: memref<8x1xf32, #tpu.memory_space<vmem>>, %arg7: memref<8x1xf32, #tpu.memory_space<vmem>>, %arg8: memref<1x8x256xf32, #tpu.memory_space<vmem>>, %arg9: memref<2x8x256xf32, #tpu.memory_space<vmem>>, %arg10: memref<8x1xf32, #tpu.memory_space<vmem>>, %arg11: memref<8x1xf32, #tpu.memory_space<vmem>>, %arg12: memref<8x290xf32, #tpu.memory_space<vmem>>) attributes {dimension_semantics = [#tpu.dimension_semantics<arbitrary>, #tpu.dimension_semantics<arbitrary>], iteration_bounds = array<i64: 2, 2>, scalar_prefetch = 0 : i64, scratch_operands = 4 : i64, tpu.core_type = #tpu.core_type<tc>, window_params = [{transform_indices = @transform_0, window_bounds = array<i64: 1, 8, 290>}, {pipeline_mode = #tpu.pipeline_mode<synchronous>, transform_indices = @transform_1, window_bounds = array<i64: 9, 8, 8>}, {pipeline_mode = #tpu.pipeline_mode<synchronous>, transform_indices = @transform_2, window_bounds = array<i64: 9, 8, 8>}, {pipeline_mode = #tpu.pipeline_mode<synchronous>, transform_indices = @transform_3, window_bounds = array<i64: 8, 1>}, {pipeline_mode = #tpu.pipeline_mode<synchronous>, transform_indices = @transform_4, window_bounds = array<i64: 8, 1>}, {pipeline_mode = #tpu.pipeline_mode<synchronous>, transform_indices = @transform_5, window_bounds = array<i64: 8, 1>}, {transform_indices = @transform_6, window_bounds = array<i64: 1, 8, 256>}]} {
    %c0_i32 = arith.constant 0 : i32
    %0 = arith.cmpi eq, %arg0, %c0_i32 : i32
    %1 = arith.extui %0 : i1 to i32
    %c0_i32_0 = arith.constant 0 : i32
    %2 = arith.cmpi ne, %1, %c0_i32_0 : i32
    scf.if %2 {
      %c0_i32_2 = arith.constant 0 : i32
      %6 = arith.cmpi eq, %arg1, %c0_i32_2 : i32
      %7 = arith.extui %6 : i1 to i32
      %c0_i32_3 = arith.constant 0 : i32
      %8 = arith.cmpi ne, %7, %c0_i32_3 : i32
      scf.if %8 {
        %cst_75 = arith.constant 0.000000e+00 : f32
        %110 = vector.broadcast %cst_75 : f32 to vector<8x1xf32>
        %c0_76 = arith.constant 0 : index
        %c0_77 = arith.constant 0 : index
        %111 = vector.load %arg10[%c0_76, %c0_77] : memref<8x1xf32, #tpu.memory_space<vmem>>, vector<8x1xf32>
        tpu.vector_store %arg10[%c0_76, %c0_77], %110 {strides = array<i32>} : memref<8x1xf32, #tpu.memory_space<vmem>>, vector<8x1xf32>,
        %cst_78 = arith.constant 0.000000e+00 : f32
        %112 = vector.broadcast %cst_78 : f32 to vector<8x1xf32>
        %c0_79 = arith.constant 0 : index
        %c0_80 = arith.constant 0 : index
        %113 = vector.load %arg11[%c0_79, %c0_80] : memref<8x1xf32, #tpu.memory_space<vmem>>, vector<8x1xf32>
        tpu.vector_store %arg11[%c0_79, %c0_80], %112 {strides = array<i32>} : memref<8x1xf32, #tpu.memory_space<vmem>>, vector<8x1xf32>,
      } else {
      }
      %9 = tpu.iota {dimensions = array<i32: 1>} : vector<8x256xi32>
      %c16_i32 = arith.constant 16 : i32
      %c0_i32_4 = arith.constant 0 : i32
      %10 = arith.cmpi eq, %c16_i32, %c0_i32_4 : i32
      %c1_i32_5 = arith.constant 1 : i32
      %11 = arith.select %10, %c1_i32_5, %c16_i32 : i32
      %12 = vector.broadcast %11 : i32 to vector<8x256xi32>
      %13 = arith.remsi %9, %12 : vector<8x256xi32>
      %c0_i32_6 = arith.constant 0 : i32
      %14 = vector.broadcast %c0_i32_6 : i32 to vector<8x256xi32>
      %15 = arith.cmpi ne, %13, %14 : vector<8x256xi32>
      %c0_i32_7 = arith.constant 0 : i32
      %16 = vector.broadcast %c0_i32_7 : i32 to vector<8x256xi32>
      %17 = arith.cmpi slt, %13, %16 : vector<8x256xi32>
      %c0_i32_8 = arith.constant 0 : i32
      %18 = arith.cmpi slt, %11, %c0_i32_8 : i32
      %19 = vector.broadcast %18 : i1 to vector<8x256xi1>
      %20 = vector.broadcast %19 : vector<8x256xi1> to vector<8x256xi1>
      %21 = arith.xori %17, %20 : vector<8x256xi1>
      %22 = arith.andi %21, %15 : vector<8x256xi1>
      %23 = vector.broadcast %11 : i32 to vector<8x256xi32>
      %24 = arith.addi %13, %23 : vector<8x256xi32>
      %25 = arith.select %22, %24, %13 : vector<8x256xi1>, vector<8x256xi32>
      %c1_i32_9 = arith.constant 1 : i32
      %26 = vector.broadcast %c1_i32_9 : i32 to vector<8x256xi32>
      %27 = arith.cmpi sge, %25, %26 : vector<8x256xi32>
      %c14_i32 = arith.constant 14 : i32
      %28 = vector.broadcast %c14_i32 : i32 to vector<8x256xi32>
      %29 = arith.cmpi sle, %25, %28 : vector<8x256xi32>
      %c0 = arith.constant 0 : index
      %c0_10 = arith.constant 0 : index
      %c0_11 = arith.constant 0 : index
      %30 = vector.load %arg2[%c0, %c0_10, %c0_11] : memref<1x8x290xf32, #tpu.memory_space<vmem>>, vector<1x8x256xf32>
      %31 = vector.shape_cast %30 : vector<1x8x256xf32> to vector<8x256xf32>
      %cst = arith.constant 0.000000e+00 : f32
      %32 = vector.broadcast %cst : f32 to vector<8x256xf32>
      %33 = arith.select %27, %31, %32 : vector<8x256xi1>, vector<8x256xf32>
      %c0_12 = arith.constant 0 : index
      %c0_13 = arith.constant 0 : index
      %c0_14 = arith.constant 0 : index
      %34 = vector.load %arg3[%c0_12, %c0_13, %c0_14] : memref<9x8x8xf32, #tpu.memory_space<vmem>>, vector<1x8x8xf32>
      %35 = vector.shape_cast %34 : vector<1x8x8xf32> to vector<8x8xf32>
      %cst_15 = arith.constant dense<0.000000e+00> : vector<8x256xf32>
      %36 = tpu.matmul %35, %33, %cst_15 {dimension_numbers = #tpu.dot_dimension_numbers<[1], [0], [0], [1], [0, 0, 1, 1], [], []>} : vector<8x8xf32>, vector<8x256xf32>, vector<8x256xf32> -> vector<8x256xf32>
      %c0_16 = arith.constant 0 : index
      %c0_17 = arith.constant 0 : index
      %c1 = arith.constant 1 : index
      %37 = vector.load %arg2[%c0_16, %c0_17, %c1] : memref<1x8x290xf32, #tpu.memory_space<vmem>>, vector<1x8x256xf32>
      %38 = vector.shape_cast %37 : vector<1x8x256xf32> to vector<8x256xf32>
      %c1_18 = arith.constant 1 : index
      %c0_19 = arith.constant 0 : index
      %c0_20 = arith.constant 0 : index
      %39 = vector.load %arg3[%c1_18, %c0_19, %c0_20] : memref<9x8x8xf32, #tpu.memory_space<vmem>>, vector<1x8x8xf32>
      %40 = vector.shape_cast %39 : vector<1x8x8xf32> to vector<8x8xf32>
      %cst_21 = arith.constant dense<0.000000e+00> : vector<8x256xf32>
      %41 = tpu.matmul %40, %38, %cst_21 {dimension_numbers = #tpu.dot_dimension_numbers<[1], [0], [0], [1], [0, 0, 1, 1], [], []>} : vector<8x8xf32>, vector<8x256xf32>, vector<8x256xf32> -> vector<8x256xf32>
      %42 = arith.addf %36, %41 : vector<8x256xf32>
      %c0_22 = arith.constant 0 : index
      %c0_23 = arith.constant 0 : index
      %c2 = arith.constant 2 : index
      %43 = vector.load %arg2[%c0_22, %c0_23, %c2] : memref<1x8x290xf32, #tpu.memory_space<vmem>>, vector<1x8x256xf32>
      %44 = vector.shape_cast %43 : vector<1x8x256xf32> to vector<8x256xf32>
      %cst_24 = arith.constant 0.000000e+00 : f32
      %45 = vector.broadcast %cst_24 : f32 to vector<8x256xf32>
      %46 = arith.select %29, %44, %45 : vector<8x256xi1>, vector<8x256xf32>
      %c2_25 = arith.constant 2 : index
      %c0_26 = arith.constant 0 : index
      %c0_27 = arith.constant 0 : index
      %47 = vector.load %arg3[%c2_25, %c0_26, %c0_27] : memref<9x8x8xf32, #tpu.memory_space<vmem>>, vector<1x8x8xf32>
      %48 = vector.shape_cast %47 : vector<1x8x8xf32> to vector<8x8xf32>
      %cst_28 = arith.constant dense<0.000000e+00> : vector<8x256xf32>
      %49 = tpu.matmul %48, %46, %cst_28 {dimension_numbers = #tpu.dot_dimension_numbers<[1], [0], [0], [1], [0, 0, 1, 1], [], []>} : vector<8x8xf32>, vector<8x256xf32>, vector<8x256xf32> -> vector<8x256xf32>
      %50 = arith.addf %42, %49 : vector<8x256xf32>
      %c0_29 = arith.constant 0 : index
      %c0_30 = arith.constant 0 : index
      %c16 = arith.constant 16 : index
      %51 = vector.load %arg2[%c0_29, %c0_30, %c16] : memref<1x8x290xf32, #tpu.memory_space<vmem>>, vector<1x8x256xf32>
      %52 = vector.shape_cast %51 : vector<1x8x256xf32> to vector<8x256xf32>
      %cst_31 = arith.constant 0.000000e+00 : f32
      %53 = vector.broadcast %cst_31 : f32 to vector<8x256xf32>
      %54 = arith.select %27, %52, %53 : vector<8x256xi1>, vector<8x256xf32>
      %c3 = arith.constant 3 : index
      %c0_32 = arith.constant 0 : index
      %c0_33 = arith.constant 0 : index
      %55 = vector.load %arg3[%c3, %c0_32, %c0_33] : memref<9x8x8xf32, #tpu.memory_space<vmem>>, vector<1x8x8xf32>
      %56 = vector.shape_cast %55 : vector<1x8x8xf32> to vector<8x8xf32>
      %cst_34 = arith.constant dense<0.000000e+00> : vector<8x256xf32>
      %57 = tpu.matmul %56, %54, %cst_34 {dimension_numbers = #tpu.dot_dimension_numbers<[1], [0], [0], [1], [0, 0, 1, 1], [], []>} : vector<8x8xf32>, vector<8x256xf32>, vector<8x256xf32> -> vector<8x256xf32>
      %58 = arith.addf %50, %57 : vector<8x256xf32>
      %c0_35 = arith.constant 0 : index
      %c0_36 = arith.constant 0 : index
      %c17 = arith.constant 17 : index
      %59 = vector.load %arg2[%c0_35, %c0_36, %c17] : memref<1x8x290xf32, #tpu.memory_space<vmem>>, vector<1x8x256xf32>
      %60 = vector.shape_cast %59 : vector<1x8x256xf32> to vector<8x256xf32>
      %c4 = arith.constant 4 : index
      %c0_37 = arith.constant 0 : index
      %c0_38 = arith.constant 0 : index
      %61 = vector.load %arg3[%c4, %c0_37, %c0_38] : memref<9x8x8xf32, #tpu.memory_space<vmem>>, vector<1x8x8xf32>
      %62 = vector.shape_cast %61 : vector<1x8x8xf32> to vector<8x8xf32>
      %cst_39 = arith.constant dense<0.000000e+00> : vector<8x256xf32>
      %63 = tpu.matmul %62, %60, %cst_39 {dimension_numbers = #tpu.dot_dimension_numbers<[1], [0], [0], [1], [0, 0, 1, 1], [], []>} : vector<8x8xf32>, vector<8x256xf32>, vector<8x256xf32> -> vector<8x256xf32>
      %64 = arith.addf %58, %63 : vector<8x256xf32>
      %c0_40 = arith.constant 0 : index
      %c0_41 = arith.constant 0 : index
      %c18 = arith.constant 18 : index
      %65 = vector.load %arg2[%c0_40, %c0_41, %c18] : memref<1x8x290xf32, #tpu.memory_space<vmem>>, vector<1x8x256xf32>
      %66 = vector.shape_cast %65 : vector<1x8x256xf32> to vector<8x256xf32>
      %cst_42 = arith.constant 0.000000e+00 : f32
      %67 = vector.broadcast %cst_42 : f32 to vector<8x256xf32>
      %68 = arith.select %29, %66, %67 : vector<8x256xi1>, vector<8x256xf32>
      %c5 = arith.constant 5 : index
      %c0_43 = arith.constant 0 : index
      %c0_44 = arith.constant 0 : index
      %69 = vector.load %arg3[%c5, %c0_43, %c0_44] : memref<9x8x8xf32, #tpu.memory_space<vmem>>, vector<1x8x8xf32>
      %70 = vector.shape_cast %69 : vector<1x8x8xf32> to vector<8x8xf32>
      %cst_45 = arith.constant dense<0.000000e+00> : vector<8x256xf32>
      %71 = tpu.matmul %70, %68, %cst_45 {dimension_numbers = #tpu.dot_dimension_numbers<[1], [0], [0], [1], [0, 0, 1, 1], [], []>} : vector<8x8xf32>, vector<8x256xf32>, vector<8x256xf32> -> vector<8x256xf32>
      %72 = arith.addf %64, %71 : vector<8x256xf32>
      %c0_46 = arith.constant 0 : index
      %c0_47 = arith.constant 0 : index
      %c32 = arith.constant 32 : index
      %73 = vector.load %arg2[%c0_46, %c0_47, %c32] : memref<1x8x290xf32, #tpu.memory_space<vmem>>, vector<1x8x256xf32>
      %74 = vector.shape_cast %73 : vector<1x8x256xf32> to vector<8x256xf32>
      %cst_48 = arith.constant 0.000000e+00 : f32
      %75 = vector.broadcast %cst_48 : f32 to vector<8x256xf32>
      %76 = arith.select %27, %74, %75 : vector<8x256xi1>, vector<8x256xf32>
      %c6 = arith.constant 6 : index
      %c0_49 = arith.constant 0 : index
      %c0_50 = arith.constant 0 : index
      %77 = vector.load %arg3[%c6, %c0_49, %c0_50] : memref<9x8x8xf32, #tpu.memory_space<vmem>>, vector<1x8x8xf32>
      %78 = vector.shape_cast %77 : vector<1x8x8xf32> to vector<8x8xf32>
      %cst_51 = arith.constant dense<0.000000e+00> : vector<8x256xf32>
      %79 = tpu.matmul %78, %76, %cst_51 {dimension_numbers = #tpu.dot_dimension_numbers<[1], [0], [0], [1], [0, 0, 1, 1], [], []>} : vector<8x8xf32>, vector<8x256xf32>, vector<8x256xf32> -> vector<8x256xf32>
      %80 = arith.addf %72, %79 : vector<8x256xf32>
      %c0_52 = arith.constant 0 : index
      %c0_53 = arith.constant 0 : index
      %c33 = arith.constant 33 : index
      %81 = vector.load %arg2[%c0_52, %c0_53, %c33] : memref<1x8x290xf32, #tpu.memory_space<vmem>>, vector<1x8x256xf32>
      %82 = vector.shape_cast %81 : vector<1x8x256xf32> to vector<8x256xf32>
      %c7 = arith.constant 7 : index
      %c0_54 = arith.constant 0 : index
      %c0_55 = arith.constant 0 : index
      %83 = vector.load %arg3[%c7, %c0_54, %c0_55] : memref<9x8x8xf32, #tpu.memory_space<vmem>>, vector<1x8x8xf32>
      %84 = vector.shape_cast %83 : vector<1x8x8xf32> to vector<8x8xf32>
      %cst_56 = arith.constant dense<0.000000e+00> : vector<8x256xf32>
      %85 = tpu.matmul %84, %82, %cst_56 {dimension_numbers = #tpu.dot_dimension_numbers<[1], [0], [0], [1], [0, 0, 1, 1], [], []>} : vector<8x8xf32>, vector<8x256xf32>, vector<8x256xf32> -> vector<8x256xf32>
      %86 = arith.addf %80, %85 : vector<8x256xf32>
      %c0_57 = arith.constant 0 : index
      %c0_58 = arith.constant 0 : index
      %c34 = arith.constant 34 : index
      %87 = vector.load %arg2[%c0_57, %c0_58, %c34] : memref<1x8x290xf32, #tpu.memory_space<vmem>>, vector<1x8x256xf32>
      %88 = vector.shape_cast %87 : vector<1x8x256xf32> to vector<8x256xf32>
      %cst_59 = arith.constant 0.000000e+00 : f32
      %89 = vector.broadcast %cst_59 : f32 to vector<8x256xf32>
      %90 = arith.select %29, %88, %89 : vector<8x256xi1>, vector<8x256xf32>
      %c8 = arith.constant 8 : index
      %c0_60 = arith.constant 0 : index
      %c0_61 = arith.constant 0 : index
      %91 = vector.load %arg3[%c8, %c0_60, %c0_61] : memref<9x8x8xf32, #tpu.memory_space<vmem>>, vector<1x8x8xf32>
      %92 = vector.shape_cast %91 : vector<1x8x8xf32> to vector<8x8xf32>
      %cst_62 = arith.constant dense<0.000000e+00> : vector<8x256xf32>
      %93 = tpu.matmul %92, %90, %cst_62 {dimension_numbers = #tpu.dot_dimension_numbers<[1], [0], [0], [1], [0, 0, 1, 1], [], []>} : vector<8x8xf32>, vector<8x256xf32>, vector<8x256xf32> -> vector<8x256xf32>
      %94 = arith.addf %86, %93 : vector<8x256xf32>
      %95 = arith.index_cast %arg1 : i32 to index
      %c0_63 = arith.constant 0 : index
      %c0_64 = arith.constant 0 : index
      %96 = vector.load %arg9[%95, %c0_63, %c0_64] : memref<2x8x256xf32, #tpu.memory_space<vmem>>, vector<1x8x256xf32>
      %97 = vector.shape_cast %96 : vector<1x8x256xf32> to vector<8x256xf32>
      %98 = vector.shape_cast %94 : vector<8x256xf32> to vector<1x8x256xf32>
      tpu.vector_store %arg9[%95, %c0_63, %c0_64], %98 {strides = array<i32>} : memref<2x8x256xf32, #tpu.memory_space<vmem>>, vector<1x8x256xf32>,
      %c0_65 = arith.constant 0 : index
      %c0_66 = arith.constant 0 : index
      %99 = vector.load %arg10[%c0_65, %c0_66] : memref<8x1xf32, #tpu.memory_space<vmem>>, vector<8x1xf32>
      %cst_67 = arith.constant dense<0.000000e+00> : vector<8xf32>
      %100 = vector.multi_reduction <add>, %94, %cst_67 [1] : vector<8x256xf32> to vector<8xf32>
      %101 = vector.shape_cast %100 : vector<8xf32> to vector<8x1xf32>
      %102 = arith.addf %99, %101 : vector<8x1xf32>
      %c0_68 = arith.constant 0 : index
      %c0_69 = arith.constant 0 : index
      %103 = vector.load %arg10[%c0_68, %c0_69] : memref<8x1xf32, #tpu.memory_space<vmem>>, vector<8x1xf32>
      tpu.vector_store %arg10[%c0_68, %c0_69], %102 {strides = array<i32>} : memref<8x1xf32, #tpu.memory_space<vmem>>, vector<8x1xf32>,
      %c0_70 = arith.constant 0 : index
      %c0_71 = arith.constant 0 : index
      %104 = vector.load %arg11[%c0_70, %c0_71] : memref<8x1xf32, #tpu.memory_space<vmem>>, vector<8x1xf32>
      %105 = arith.mulf %94, %94 : vector<8x256xf32>
      %cst_72 = arith.constant dense<0.000000e+00> : vector<8xf32>
      %106 = vector.multi_reduction <add>, %105, %cst_72 [1] : vector<8x256xf32> to vector<8xf32>
      %107 = vector.shape_cast %106 : vector<8xf32> to vector<8x1xf32>
      %108 = arith.addf %104, %107 : vector<8x1xf32>
      %c0_73 = arith.constant 0 : index
      %c0_74 = arith.constant 0 : index
      %109 = vector.load %arg11[%c0_73, %c0_74] : memref<8x1xf32, #tpu.memory_space<vmem>>, vector<8x1xf32>
      tpu.vector_store %arg11[%c0_73, %c0_74], %108 {strides = array<i32>} : memref<8x1xf32, #tpu.memory_space<vmem>>, vector<8x1xf32>,
    } else {
    }
    %c1_i32 = arith.constant 1 : i32
    %3 = arith.cmpi eq, %arg0, %c1_i32 : i32
    %4 = arith.extui %3 : i1 to i32
    %c0_i32_1 = arith.constant 0 : i32
    %5 = arith.cmpi ne, %4, %c0_i32_1 : i32
    scf.if %5 {
      %c0_i32_2 = arith.constant 0 : i32
      %6 = arith.cmpi eq, %arg1, %c0_i32_2 : i32
      %7 = arith.extui %6 : i1 to i32
      %c0_i32_3 = arith.constant 0 : i32
      %8 = arith.cmpi ne, %7, %c0_i32_3 : i32
      scf.if %8 {
        %cst_79 = arith.constant 0.000000e+00 : f32
        %123 = vector.broadcast %cst_79 : f32 to vector<8x290xf32>
        %c0_80 = arith.constant 0 : index
        %c0_81 = arith.constant 0 : index
        %124 = vector.load %arg12[%c0_80, %c0_81] : memref<8x290xf32, #tpu.memory_space<vmem>>, vector<8x290xf32>
        tpu.vector_store %arg12[%c0_80, %c0_81], %123 {strides = array<i32>} : memref<8x290xf32, #tpu.memory_space<vmem>>, vector<8x290xf32>,
      } else {
      }
      %c0 = arith.constant 0 : index
      %c0_4 = arith.constant 0 : index
      %9 = vector.load %arg10[%c0, %c0_4] : memref<8x1xf32, #tpu.memory_space<vmem>>, vector<8x1xf32>
      %cst = arith.constant 0.001953125 : f32
      %10 = vector.broadcast %cst : f32 to vector<8x1xf32>
      %11 = arith.mulf %9, %10 : vector<8x1xf32>
      %c0_5 = arith.constant 0 : index
      %c0_6 = arith.constant 0 : index
      %12 = vector.load %arg11[%c0_5, %c0_6] : memref<8x1xf32, #tpu.memory_space<vmem>>, vector<8x1xf32>
      %cst_7 = arith.constant 0.001953125 : f32
      %13 = vector.broadcast %cst_7 : f32 to vector<8x1xf32>
      %14 = arith.mulf %12, %13 : vector<8x1xf32>
      %15 = arith.mulf %11, %11 : vector<8x1xf32>
      %16 = arith.subf %14, %15 : vector<8x1xf32>
      %cst_8 = arith.constant 0.000000e+00 : f32
      %17 = vector.broadcast %cst_8 : f32 to vector<8x1xf32>
      %18 = arith.maximumf %16, %17 : vector<8x1xf32>
      %c0_9 = arith.constant 0 : index
      %c0_10 = arith.constant 0 : index
      %19 = vector.load %arg5[%c0_9, %c0_10] : memref<8x1xf32, #tpu.memory_space<vmem>>, vector<8x1xf32>
      %cst_11 = arith.constant 9.99999974E-6 : f32
      %20 = vector.broadcast %cst_11 : f32 to vector<8x1xf32>
      %21 = arith.addf %18, %20 : vector<8x1xf32>
      %22 = math.rsqrt %21 : vector<8x1xf32>
      %23 = arith.mulf %19, %22 : vector<8x1xf32>
      %c0_12 = arith.constant 0 : index
      %c0_13 = arith.constant 0 : index
      %24 = vector.load %arg6[%c0_12, %c0_13] : memref<8x1xf32, #tpu.memory_space<vmem>>, vector<8x1xf32>
      %25 = arith.mulf %11, %23 : vector<8x1xf32>
      %26 = arith.subf %24, %25 : vector<8x1xf32>
      %27 = arith.index_cast %arg1 : i32 to index
      %c0_14 = arith.constant 0 : index
      %c0_15 = arith.constant 0 : index
      %28 = vector.load %arg9[%27, %c0_14, %c0_15] : memref<2x8x256xf32, #tpu.memory_space<vmem>>, vector<1x8x256xf32>
      %29 = vector.shape_cast %28 : vector<1x8x256xf32> to vector<8x256xf32>
      %30 = vector.broadcast %23 : vector<8x1xf32> to vector<8x256xf32>
      %31 = arith.mulf %29, %30 : vector<8x256xf32>
      %32 = vector.broadcast %26 : vector<8x1xf32> to vector<8x256xf32>
      %33 = arith.addf %31, %32 : vector<8x256xf32>
      %cst_16 = arith.constant 0.000000e+00 : f32
      %34 = vector.broadcast %cst_16 : f32 to vector<8x256xf32>
      %35 = arith.maximumf %33, %34 : vector<8x256xf32>
      %c0_17 = arith.constant 0 : index
      %c17 = arith.constant 17 : index
      %36 = vector.load %arg12[%c0_17, %c17] : memref<8x290xf32, #tpu.memory_space<vmem>>, vector<8x256xf32>
      tpu.vector_store %arg12[%c0_17, %c17], %35 {strides = array<i32>} : memref<8x290xf32, #tpu.memory_space<vmem>>, vector<8x256xf32>,
      %37 = tpu.iota {dimensions = array<i32: 1>} : vector<8x256xi32>
      %c16_i32 = arith.constant 16 : i32
      %c0_i32_18 = arith.constant 0 : i32
      %38 = arith.cmpi eq, %c16_i32, %c0_i32_18 : i32
      %c1_i32_19 = arith.constant 1 : i32
      %39 = arith.select %38, %c1_i32_19, %c16_i32 : i32
      %40 = vector.broadcast %39 : i32 to vector<8x256xi32>
      %41 = arith.remsi %37, %40 : vector<8x256xi32>
      %c0_i32_20 = arith.constant 0 : i32
      %42 = vector.broadcast %c0_i32_20 : i32 to vector<8x256xi32>
      %43 = arith.cmpi ne, %41, %42 : vector<8x256xi32>
      %c0_i32_21 = arith.constant 0 : i32
      %44 = vector.broadcast %c0_i32_21 : i32 to vector<8x256xi32>
      %45 = arith.cmpi slt, %41, %44 : vector<8x256xi32>
      %c0_i32_22 = arith.constant 0 : i32
      %46 = arith.cmpi slt, %39, %c0_i32_22 : i32
      %47 = vector.broadcast %46 : i1 to vector<8x256xi1>
      %48 = vector.broadcast %47 : vector<8x256xi1> to vector<8x256xi1>
      %49 = arith.xori %45, %48 : vector<8x256xi1>
      %50 = arith.andi %49, %43 : vector<8x256xi1>
      %51 = vector.broadcast %39 : i32 to vector<8x256xi32>
      %52 = arith.addi %41, %51 : vector<8x256xi32>
      %53 = arith.select %50, %52, %41 : vector<8x256xi1>, vector<8x256xi32>
      %c1_i32_23 = arith.constant 1 : i32
      %54 = vector.broadcast %c1_i32_23 : i32 to vector<8x256xi32>
      %55 = arith.cmpi sge, %53, %54 : vector<8x256xi32>
      %c14_i32 = arith.constant 14 : i32
      %56 = vector.broadcast %c14_i32 : i32 to vector<8x256xi32>
      %57 = arith.cmpi sle, %53, %56 : vector<8x256xi32>
      %c0_24 = arith.constant 0 : index
      %c0_25 = arith.constant 0 : index
      %58 = vector.load %arg12[%c0_24, %c0_25] : memref<8x290xf32, #tpu.memory_space<vmem>>, vector<8x256xf32>
      %cst_26 = arith.constant 0.000000e+00 : f32
      %59 = vector.broadcast %cst_26 : f32 to vector<8x256xf32>
      %60 = arith.select %55, %58, %59 : vector<8x256xi1>, vector<8x256xf32>
      %c0_27 = arith.constant 0 : index
      %c0_28 = arith.constant 0 : index
      %c0_29 = arith.constant 0 : index
      %61 = vector.load %arg4[%c0_27, %c0_28, %c0_29] : memref<9x8x8xf32, #tpu.memory_space<vmem>>, vector<1x8x8xf32>
      %62 = vector.shape_cast %61 : vector<1x8x8xf32> to vector<8x8xf32>
      %cst_30 = arith.constant dense<0.000000e+00> : vector<8x256xf32>
      %63 = tpu.matmul %62, %60, %cst_30 {dimension_numbers = #tpu.dot_dimension_numbers<[1], [0], [0], [1], [0, 0, 1, 1], [], []>} : vector<8x8xf32>, vector<8x256xf32>, vector<8x256xf32> -> vector<8x256xf32>
      %c0_31 = arith.constant 0 : index
      %c1 = arith.constant 1 : index
      %64 = vector.load %arg12[%c0_31, %c1] : memref<8x290xf32, #tpu.memory_space<vmem>>, vector<8x256xf32>
      %c1_32 = arith.constant 1 : index
      %c0_33 = arith.constant 0 : index
      %c0_34 = arith.constant 0 : index
      %65 = vector.load %arg4[%c1_32, %c0_33, %c0_34] : memref<9x8x8xf32, #tpu.memory_space<vmem>>, vector<1x8x8xf32>
      %66 = vector.shape_cast %65 : vector<1x8x8xf32> to vector<8x8xf32>
      %cst_35 = arith.constant dense<0.000000e+00> : vector<8x256xf32>
      %67 = tpu.matmul %66, %64, %cst_35 {dimension_numbers = #tpu.dot_dimension_numbers<[1], [0], [0], [1], [0, 0, 1, 1], [], []>} : vector<8x8xf32>, vector<8x256xf32>, vector<8x256xf32> -> vector<8x256xf32>
      %68 = arith.addf %63, %67 : vector<8x256xf32>
      %c0_36 = arith.constant 0 : index
      %c2 = arith.constant 2 : index
      %69 = vector.load %arg12[%c0_36, %c2] : memref<8x290xf32, #tpu.memory_space<vmem>>, vector<8x256xf32>
      %cst_37 = arith.constant 0.000000e+00 : f32
      %70 = vector.broadcast %cst_37 : f32 to vector<8x256xf32>
      %71 = arith.select %57, %69, %70 : vector<8x256xi1>, vector<8x256xf32>
      %c2_38 = arith.constant 2 : index
      %c0_39 = arith.constant 0 : index
      %c0_40 = arith.constant 0 : index
      %72 = vector.load %arg4[%c2_38, %c0_39, %c0_40] : memref<9x8x8xf32, #tpu.memory_space<vmem>>, vector<1x8x8xf32>
      %73 = vector.shape_cast %72 : vector<1x8x8xf32> to vector<8x8xf32>
      %cst_41 = arith.constant dense<0.000000e+00> : vector<8x256xf32>
      %74 = tpu.matmul %73, %71, %cst_41 {dimension_numbers = #tpu.dot_dimension_numbers<[1], [0], [0], [1], [0, 0, 1, 1], [], []>} : vector<8x8xf32>, vector<8x256xf32>, vector<8x256xf32> -> vector<8x256xf32>
      %75 = arith.addf %68, %74 : vector<8x256xf32>
      %c0_42 = arith.constant 0 : index
      %c16 = arith.constant 16 : index
      %76 = vector.load %arg12[%c0_42, %c16] : memref<8x290xf32, #tpu.memory_space<vmem>>, vector<8x256xf32>
      %cst_43 = arith.constant 0.000000e+00 : f32
      %77 = vector.broadcast %cst_43 : f32 to vector<8x256xf32>
      %78 = arith.select %55, %76, %77 : vector<8x256xi1>, vector<8x256xf32>
      %c3 = arith.constant 3 : index
      %c0_44 = arith.constant 0 : index
      %c0_45 = arith.constant 0 : index
      %79 = vector.load %arg4[%c3, %c0_44, %c0_45] : memref<9x8x8xf32, #tpu.memory_space<vmem>>, vector<1x8x8xf32>
      %80 = vector.shape_cast %79 : vector<1x8x8xf32> to vector<8x8xf32>
      %cst_46 = arith.constant dense<0.000000e+00> : vector<8x256xf32>
      %81 = tpu.matmul %80, %78, %cst_46 {dimension_numbers = #tpu.dot_dimension_numbers<[1], [0], [0], [1], [0, 0, 1, 1], [], []>} : vector<8x8xf32>, vector<8x256xf32>, vector<8x256xf32> -> vector<8x256xf32>
      %82 = arith.addf %75, %81 : vector<8x256xf32>
      %c0_47 = arith.constant 0 : index
      %c17_48 = arith.constant 17 : index
      %83 = vector.load %arg12[%c0_47, %c17_48] : memref<8x290xf32, #tpu.memory_space<vmem>>, vector<8x256xf32>
      %c4 = arith.constant 4 : index
      %c0_49 = arith.constant 0 : index
      %c0_50 = arith.constant 0 : index
      %84 = vector.load %arg4[%c4, %c0_49, %c0_50] : memref<9x8x8xf32, #tpu.memory_space<vmem>>, vector<1x8x8xf32>
      %85 = vector.shape_cast %84 : vector<1x8x8xf32> to vector<8x8xf32>
      %cst_51 = arith.constant dense<0.000000e+00> : vector<8x256xf32>
      %86 = tpu.matmul %85, %83, %cst_51 {dimension_numbers = #tpu.dot_dimension_numbers<[1], [0], [0], [1], [0, 0, 1, 1], [], []>} : vector<8x8xf32>, vector<8x256xf32>, vector<8x256xf32> -> vector<8x256xf32>
      %87 = arith.addf %82, %86 : vector<8x256xf32>
      %c0_52 = arith.constant 0 : index
      %c18 = arith.constant 18 : index
      %88 = vector.load %arg12[%c0_52, %c18] : memref<8x290xf32, #tpu.memory_space<vmem>>, vector<8x256xf32>
      %cst_53 = arith.constant 0.000000e+00 : f32
      %89 = vector.broadcast %cst_53 : f32 to vector<8x256xf32>
      %90 = arith.select %57, %88, %89 : vector<8x256xi1>, vector<8x256xf32>
      %c5 = arith.constant 5 : index
      %c0_54 = arith.constant 0 : index
      %c0_55 = arith.constant 0 : index
      %91 = vector.load %arg4[%c5, %c0_54, %c0_55] : memref<9x8x8xf32, #tpu.memory_space<vmem>>, vector<1x8x8xf32>
      %92 = vector.shape_cast %91 : vector<1x8x8xf32> to vector<8x8xf32>
      %cst_56 = arith.constant dense<0.000000e+00> : vector<8x256xf32>
      %93 = tpu.matmul %92, %90, %cst_56 {dimension_numbers = #tpu.dot_dimension_numbers<[1], [0], [0], [1], [0, 0, 1, 1], [], []>} : vector<8x8xf32>, vector<8x256xf32>, vector<8x256xf32> -> vector<8x256xf32>
      %94 = arith.addf %87, %93 : vector<8x256xf32>
      %c0_57 = arith.constant 0 : index
      %c32 = arith.constant 32 : index
      %95 = vector.load %arg12[%c0_57, %c32] : memref<8x290xf32, #tpu.memory_space<vmem>>, vector<8x256xf32>
      %cst_58 = arith.constant 0.000000e+00 : f32
      %96 = vector.broadcast %cst_58 : f32 to vector<8x256xf32>
      %97 = arith.select %55, %95, %96 : vector<8x256xi1>, vector<8x256xf32>
      %c6 = arith.constant 6 : index
      %c0_59 = arith.constant 0 : index
      %c0_60 = arith.constant 0 : index
      %98 = vector.load %arg4[%c6, %c0_59, %c0_60] : memref<9x8x8xf32, #tpu.memory_space<vmem>>, vector<1x8x8xf32>
      %99 = vector.shape_cast %98 : vector<1x8x8xf32> to vector<8x8xf32>
      %cst_61 = arith.constant dense<0.000000e+00> : vector<8x256xf32>
      %100 = tpu.matmul %99, %97, %cst_61 {dimension_numbers = #tpu.dot_dimension_numbers<[1], [0], [0], [1], [0, 0, 1, 1], [], []>} : vector<8x8xf32>, vector<8x256xf32>, vector<8x256xf32> -> vector<8x256xf32>
      %101 = arith.addf %94, %100 : vector<8x256xf32>
      %c0_62 = arith.constant 0 : index
      %c33 = arith.constant 33 : index
      %102 = vector.load %arg12[%c0_62, %c33] : memref<8x290xf32, #tpu.memory_space<vmem>>, vector<8x256xf32>
      %c7 = arith.constant 7 : index
      %c0_63 = arith.constant 0 : index
      %c0_64 = arith.constant 0 : index
      %103 = vector.load %arg4[%c7, %c0_63, %c0_64] : memref<9x8x8xf32, #tpu.memory_space<vmem>>, vector<1x8x8xf32>
      %104 = vector.shape_cast %103 : vector<1x8x8xf32> to vector<8x8xf32>
      %cst_65 = arith.constant dense<0.000000e+00> : vector<8x256xf32>
      %105 = tpu.matmul %104, %102, %cst_65 {dimension_numbers = #tpu.dot_dimension_numbers<[1], [0], [0], [1], [0, 0, 1, 1], [], []>} : vector<8x8xf32>, vector<8x256xf32>, vector<8x256xf32> -> vector<8x256xf32>
      %106 = arith.addf %101, %105 : vector<8x256xf32>
      %c0_66 = arith.constant 0 : index
      %c34 = arith.constant 34 : index
      %107 = vector.load %arg12[%c0_66, %c34] : memref<8x290xf32, #tpu.memory_space<vmem>>, vector<8x256xf32>
      %cst_67 = arith.constant 0.000000e+00 : f32
      %108 = vector.broadcast %cst_67 : f32 to vector<8x256xf32>
      %109 = arith.select %57, %107, %108 : vector<8x256xi1>, vector<8x256xf32>
      %c8 = arith.constant 8 : index
      %c0_68 = arith.constant 0 : index
      %c0_69 = arith.constant 0 : index
      %110 = vector.load %arg4[%c8, %c0_68, %c0_69] : memref<9x8x8xf32, #tpu.memory_space<vmem>>, vector<1x8x8xf32>
      %111 = vector.shape_cast %110 : vector<1x8x8xf32> to vector<8x8xf32>
      %cst_70 = arith.constant dense<0.000000e+00> : vector<8x256xf32>
      %112 = tpu.matmul %111, %109, %cst_70 {dimension_numbers = #tpu.dot_dimension_numbers<[1], [0], [0], [1], [0, 0, 1, 1], [], []>} : vector<8x8xf32>, vector<8x256xf32>, vector<8x256xf32> -> vector<8x256xf32>
      %113 = arith.addf %106, %112 : vector<8x256xf32>
      %c0_71 = arith.constant 0 : index
      %c0_72 = arith.constant 0 : index
      %114 = vector.load %arg7[%c0_71, %c0_72] : memref<8x1xf32, #tpu.memory_space<vmem>>, vector<8x1xf32>
      %115 = vector.broadcast %114 : vector<8x1xf32> to vector<8x256xf32>
      %116 = arith.addf %113, %115 : vector<8x256xf32>
      %c0_73 = arith.constant 0 : index
      %c0_74 = arith.constant 0 : index
      %c17_75 = arith.constant 17 : index
      %117 = vector.load %arg2[%c0_73, %c0_74, %c17_75] : memref<1x8x290xf32, #tpu.memory_space<vmem>>, vector<1x8x256xf32>
      %118 = vector.shape_cast %117 : vector<1x8x256xf32> to vector<8x256xf32>
      %119 = arith.addf %116, %118 : vector<8x256xf32>
      %c0_76 = arith.constant 0 : index
      %c0_77 = arith.constant 0 : index
      %c0_78 = arith.constant 0 : index
      %120 = vector.load %arg8[%c0_76, %c0_77, %c0_78] : memref<1x8x256xf32, #tpu.memory_space<vmem>>, vector<1x8x256xf32>
      %121 = vector.shape_cast %120 : vector<1x8x256xf32> to vector<8x256xf32>
      %122 = vector.shape_cast %119 : vector<8x256xf32> to vector<1x8x256xf32>
      tpu.vector_store %arg8[%c0_76, %c0_77, %c0_78], %122 {strides = array<i32>} : memref<1x8x256xf32, #tpu.memory_space<vmem>>, vector<1x8x256xf32>,
    } else {
    }
    return
  }
  func.func @transform_0(%arg0: i32, %arg1: i32) -> (i32, i32, i32) {
    %c0_i32 = arith.constant 0 : i32
    %c0_i32_0 = arith.constant 0 : i32
    %c0_i32_1 = arith.constant 0 : i32
    return %arg1, %c0_i32, %c0_i32_0 : i32, i32, i32
  }
  func.func @transform_1(%arg0: i32, %arg1: i32) -> (i32, i32, i32) {
    %c0_i32 = arith.constant 0 : i32
    %c0_i32_0 = arith.constant 0 : i32
    %c0_i32_1 = arith.constant 0 : i32
    %c0_i32_2 = arith.constant 0 : i32
    return %c0_i32, %c0_i32_0, %c0_i32_1 : i32, i32, i32
  }
  func.func @transform_2(%arg0: i32, %arg1: i32) -> (i32, i32, i32) {
    %c0_i32 = arith.constant 0 : i32
    %c0_i32_0 = arith.constant 0 : i32
    %c0_i32_1 = arith.constant 0 : i32
    %c0_i32_2 = arith.constant 0 : i32
    return %c0_i32, %c0_i32_0, %c0_i32_1 : i32, i32, i32
  }
  func.func @transform_3(%arg0: i32, %arg1: i32) -> (i32, i32) {
    %c0_i32 = arith.constant 0 : i32
    %c0_i32_0 = arith.constant 0 : i32
    %c0_i32_1 = arith.constant 0 : i32
    return %c0_i32, %c0_i32_0 : i32, i32
  }
  func.func @transform_4(%arg0: i32, %arg1: i32) -> (i32, i32) {
    %c0_i32 = arith.constant 0 : i32
    %c0_i32_0 = arith.constant 0 : i32
    %c0_i32_1 = arith.constant 0 : i32
    return %c0_i32, %c0_i32_0 : i32, i32
  }
  func.func @transform_5(%arg0: i32, %arg1: i32) -> (i32, i32) {
    %c0_i32 = arith.constant 0 : i32
    %c0_i32_0 = arith.constant 0 : i32
    %c0_i32_1 = arith.constant 0 : i32
    return %c0_i32, %c0_i32_0 : i32, i32
  }
  func.func @transform_6(%arg0: i32, %arg1: i32) -> (i32, i32, i32) {
    %0 = arith.muli %arg0, %arg1 : i32
    %c0_i32 = arith.constant 0 : i32
    %c0_i32_0 = arith.constant 0 : i32
    %c0_i32_1 = arith.constant 0 : i32
    return %0, %c0_i32, %c0_i32_0 : i32, i32, i32
  }
}

</mosaic_0001>

<llo_original>
// kernel: basic_block.1
$region0: #{basic_block.1}
  #allocation0 [shape = 'u32[]', space=smem, size = 0x4, offset = 0x4, fixed_abs, tag = 'smem constant byte address 0x4 - core index']
  #allocation1 [shape = 'u32[144,128]{1,0:T(1,128)}', space=vmem, size = 0x12000, scoped, tag = 'internal scratch']
  #allocation2 [shape = 'f32[2,8,256]{2,1,0:T(8,128)}', space=vmem, size = 0x4000, scoped, tag = 'scratch operand']
  #allocation3 [shape = 'f32[8,1]{1,0:T(8,128)}', space=vmem, size = 0x1000, scoped, tag = 'scratch operand']
  #allocation4 [shape = 'f32[8,1]{1,0:T(8,128)}', space=vmem, size = 0x1000, scoped, tag = 'scratch operand']
  #allocation5 [shape = 'f32[8,290]{1,0:T(8,128)}', space=vmem, size = 0x3000, scoped, tag = 'scratch operand']
  %s0 = inlined_call_operand.vmem [shape: f32[2,8,290], index: 0, kind: input, shape index: {}]
  %s1 = inlined_call_operand.vmem [shape: f32[9,8,8], index: 1, kind: input, shape index: {}]
  %s2 = inlined_call_operand.vmem [shape: f32[9,8,8], index: 2, kind: input, shape index: {}]
  %s3 = inlined_call_operand.vmem [shape: f32[8,1], index: 3, kind: input, shape index: {}]
  %s4 = inlined_call_operand.vmem [shape: f32[8,1], index: 4, kind: input, shape index: {}]
  %s5 = inlined_call_operand.vmem [shape: f32[8,1], index: 5, kind: input, shape index: {}]
  %s6 = inlined_call_operand.vmem [shape: f32[2,8,256], index: 6, kind: output, shape index: {}]
  %s7 = sld [smem:[#allocation0]]
  $region73: #{basic_block.1} parent=0
    _
  %s9 = ssub.s32 1, %s7
  %s10 = scalar_select 0, %s9, %s7
  loop: start=0, step=1, limit=6
  $region2: #{basic_block.1} parent=0 // loop_pre_header
    _
  $region3: #{basic_block.1} parent=0 // loop_header
    %s12 = sphi 0, %s16
    %p13 = scmp.ge.s32.totalorder %s12, 6
    %s19 = sphi 0, %s31
    %s20 = sphi 0, %s27
    %s21 = sphi 0, %s19
    %s22 = sphi 0, %s20
    %s23 = sphi 0, %s21
    %s24 = sphi 0, %s22
    %s34 = sphi 0, %s36
    %s37 = sphi 0, %s34
    %s38 = sphi 0, %s37
    %s54 = sphi 0, %s38
    %s58 = sphi 0, %s58
    %s60 = sphi 0, %s58
    %s61 = sphi 0, %s60
    %s75 = sphi 0, %s61
    %s79 = sphi 0, %s79
    %s81 = sphi 0, %s79
    %s82 = sphi 0, %s81
    %s96 = sphi 0, %s82
    %s100 = sphi 0, %s100
    %s102 = sphi 0, %s100
    %s103 = sphi 0, %s102
    %s117 = sphi 0, %s103
    %s121 = sphi 0, %s121
    %s123 = sphi 0, %s121
    %s124 = sphi 0, %s123
    %s138 = sphi 0, %s124
    %s142 = sphi 0, %s142
    %s144 = sphi 0, %s142
    %s145 = sphi 0, %s144
    %s159 = sphi 0, %s145
    %s167 = sphi 0, %s169
    %s170 = sphi 0, %s167
    %s171 = sphi 0, %s170
    %s187 = sphi 0, %s171
  $region4: #{basic_block.1} parent=0 // loop_header_branch
    %15 = sbr.rel (%p13) target = $region8
  $region5: #{basic_block.1} parent=0 // loop_body
    %s17 = ssub.s32 %s12, 1
    %s18 = ssub.s32 %s12, 2
    %s25 = sadd.s32 1, %s20
    %p26 = scmp.ge.s32.totalorder %s25, 2
    %s27 = scalar_select %p26, 0, %s25
    %s28 = sadd.s32 1, %s19
    %s29 = scalar_select %p26, %s28, %s19
    %p30 = scmp.ge.s32.totalorder %s29, 2
    %s31 = scalar_select %p30, 0, %s29
    %s32 = ssub.s32 %s20, %s27
    %p33 = scmp.eq.s32.totalorder %s32, 0
    %s35 = sadd.s32 %s34, 1
    %s36 = scalar_select %p33, %s34, %s35
    %p39 = pneg %p33
    %p40 = scmp.eq.s32.totalorder %s12, 3
    %p41 = por %p39, %p40
    %p42 = scmp.ne.s32.totalorder %s34, %s37
    %p43 = scmp.eq.s32.totalorder %s12, 0
    %p44 = por %p42, %p43
    %p45 = scmp.ne.s32.totalorder %s34, %s37
    %p46 = scmp.eq.s32.totalorder %s17, 3
    %p47 = por %p45, %p46
    %p48 = scmp.ne.s32.totalorder %s37, %s38
    %p49 = scmp.eq.s32.totalorder %s17, 0
    %p50 = por %p48, %p49
    %p51 = scmp.ne.s32.totalorder %s37, %s38
    %p52 = scmp.eq.s32.totalorder %s18, 3
    %p53 = por %p51, %p52
    %p55 = scmp.ne.s32.totalorder %s38, %s54
    %p56 = scmp.eq.s32.totalorder %s18, 0
    %p57 = por %p55, %p56
    %s59 = sadd.s32 %s58, 1
    %p62 = scmp.eq.s32.totalorder %s12, 3
    %p63 = scmp.ne.s32.totalorder %s58, %s60
    %p64 = scmp.eq.s32.totalorder %s12, 0
    %p65 = por %p63, %p64
    %p66 = scmp.ne.s32.totalorder %s58, %s60
    %p67 = scmp.eq.s32.totalorder %s17, 3
    %p68 = por %p66, %p67
    %p69 = scmp.ne.s32.totalorder %s60, %s61
    %p70 = scmp.eq.s32.totalorder %s17, 0
    %p71 = por %p69, %p70
    %p72 = scmp.ne.s32.totalorder %s60, %s61
    %p73 = scmp.eq.s32.totalorder %s18, 3
    %p74 = por %p72, %p73
    %p76 = scmp.ne.s32.totalorder %s61, %s75
    %p77 = scmp.eq.s32.totalorder %s18, 0
    %p78 = por %p76, %p77
    %s80 = sadd.s32 %s79, 1
    %p83 = scmp.eq.s32.totalorder %s12, 3
    %p84 = scmp.ne.s32.totalorder %s79, %s81
    %p85 = scmp.eq.s32.totalorder %s12, 0
    %p86 = por %p84, %p85
    %p87 = scmp.ne.s32.totalorder %s79, %s81
    %p88 = scmp.eq.s32.totalorder %s17, 3
    %p89 = por %p87, %p88
    %p90 = scmp.ne.s32.totalorder %s81, %s82
    %p91 = scmp.eq.s32.totalorder %s17, 0
    %p92 = por %p90, %p91
    %p93 = scmp.ne.s32.totalorder %s81, %s82
    %p94 = scmp.eq.s32.totalorder %s18, 3
    %p95 = por %p93, %p94
    %p97 = scmp.ne.s32.totalorder %s82, %s96
    %p98 = scmp.eq.s32.totalorder %s18, 0
    %p99 = por %p97, %p98
    %s101 = sadd.s32 %s100, 1
    %p104 = scmp.eq.s32.totalorder %s12, 3
    %p105 = scmp.ne.s32.totalorder %s100, %s102
    %p106 = scmp.eq.s32.totalorder %s12, 0
    %p107 = por %p105, %p106
    %p108 = scmp.ne.s32.totalorder %s100, %s102
    %p109 = scmp.eq.s32.totalorder %s17, 3
    %p110 = por %p108, %p109
    %p111 = scmp.ne.s32.totalorder %s102, %s103
    %p112 = scmp.eq.s32.totalorder %s17, 0
    %p113 = por %p111, %p112
    %p114 = scmp.ne.s32.totalorder %s102, %s103
    %p115 = scmp.eq.s32.totalorder %s18, 3
    %p116 = por %p114, %p115
    %p118 = scmp.ne.s32.totalorder %s103, %s117
    %p119 = scmp.eq.s32.totalorder %s18, 0
    %p120 = por %p118, %p119
    %s122 = sadd.s32 %s121, 1
    %p125 = scmp.eq.s32.totalorder %s12, 3
    %p126 = scmp.ne.s32.totalorder %s121, %s123
    %p127 = scmp.eq.s32.totalorder %s12, 0
    %p128 = por %p126, %p127
    %p129 = scmp.ne.s32.totalorder %s121, %s123
    %p130 = scmp.eq.s32.totalorder %s17, 3
    %p131 = por %p129, %p130
    %p132 = scmp.ne.s32.totalorder %s123, %s124
    %p133 = scmp.eq.s32.totalorder %s17, 0
    %p134 = por %p132, %p133
    %p135 = scmp.ne.s32.totalorder %s123, %s124
    %p136 = scmp.eq.s32.totalorder %s18, 3
    %p137 = por %p135, %p136
    %p139 = scmp.ne.s32.totalorder %s124, %s138
    %p140 = scmp.eq.s32.totalorder %s18, 0
    %p141 = por %p139, %p140
    %s143 = sadd.s32 %s142, 1
    %p146 = scmp.eq.s32.totalorder %s12, 3
    %p147 = scmp.ne.s32.totalorder %s142, %s144
    %p148 = scmp.eq.s32.totalorder %s12, 0
    %p149 = por %p147, %p148
    %p150 = scmp.ne.s32.totalorder %s142, %s144
    %p151 = scmp.eq.s32.totalorder %s17, 3
    %p152 = por %p150, %p151
    %p153 = scmp.ne.s32.totalorder %s144, %s145
    %p154 = scmp.eq.s32.totalorder %s17, 0
    %p155 = por %p153, %p154
    %p156 = scmp.ne.s32.totalorder %s144, %s145
    %p157 = scmp.eq.s32.totalorder %s18, 3
    %p158 = por %p156, %p157
    %p160 = scmp.ne.s32.totalorder %s145, %s159
    %p161 = scmp.eq.s32.totalorder %s18, 0
    %p162 = por %p160, %p161
    %s163 = smul.u32 %s19, %s20
    %s164 = smul.u32 %s31, %s27
    %s165 = ssub.s32 %s163, %s164
    %p166 = scmp.eq.s32.totalorder %s165, 0
    %s168 = sadd.s32 %s167, 1
    %s169 = scalar_select %p166, %s167, %s168
    %p172 = pneg %p166
    %p173 = scmp.eq.s32.totalorder %s12, 3
    %p174 = por %p172, %p173
    %p175 = scmp.ne.s32.totalorder %s167, %s170
    %p176 = scmp.eq.s32.totalorder %s12, 0
    %p177 = por %p175, %p176
    %p178 = scmp.ne.s32.totalorder %s167, %s170
    %p179 = scmp.eq.s32.totalorder %s17, 3
    %p180 = por %p178, %p179
    %p181 = scmp.ne.s32.totalorder %s170, %s171
    %p182 = scmp.eq.s32.totalorder %s17, 0
    %p183 = por %p181, %p182
    %p184 = scmp.ne.s32.totalorder %s170, %s171
    %p185 = scmp.eq.s32.totalorder %s18, 3
    %p186 = por %p184, %p185
    %p188 = scmp.ne.s32.totalorder %s171, %s187
    %p189 = scmp.eq.s32.totalorder %s18, 0
    %p190 = por %p188, %p189
    %p191 = scmp.le.s32.totalorder 1, %s12
    %p192 = scmp.lt.s32.totalorder %s12, 5
    %p193 = pnand %p191, %p192
    %p194 = pneg %p193
    // Predicated region
    $region9: #{basic_block.1} parent=5 // pred_check
      _
    $region10: #{basic_block.1} parent=5 // pred_check_branch
      %196 = sbr.rel (%p193) target = $region12
    $region11: #{basic_block.1} parent=5 // pred_region
      %s197 = ssub.s32 %s12, 1
      // Predicated region
      $region13: #{basic_block.1} parent=11 // pred_check
        %p198 = pneg %p71
      $region14: #{basic_block.1} parent=11 // pred_check_branch
        %200 = sbr.rel (%p198) target = $region16
      $region15: #{basic_block.1} parent=11 // pred_region
        _
      $region16: #{basic_block.1} parent=11 // pred_fallthru
        _
      // Predicated region
      $region17: #{basic_block.1} parent=11 // pred_check
        %p201 = pneg %p92
      $region18: #{basic_block.1} parent=11 // pred_check_branch
        %203 = sbr.rel (%p201) target = $region20
      $region19: #{basic_block.1} parent=11 // pred_region
        _
      $region20: #{basic_block.1} parent=11 // pred_fallthru
        _
      // Predicated region
      $region21: #{basic_block.1} parent=11 // pred_check
        %p204 = pneg %p113
      $region22: #{basic_block.1} parent=11 // pred_check_branch
        %206 = sbr.rel (%p204) target = $region24
      $region23: #{basic_block.1} parent=11 // pred_region
        _
      $region24: #{basic_block.1} parent=11 // pred_fallthru
        _
      // Predicated region
      $region25: #{basic_block.1} parent=11 // pred_check
        %p207 = pneg %p134
      $region26: #{basic_block.1} parent=11 // pred_check_branch
        %209 = sbr.rel (%p207) target = $region28
      $region27: #{basic_block.1} parent=11 // pred_region
        _
      $region28: #{basic_block.1} parent=11 // pred_fallthru
        _
      // Predicated region
      $region29: #{basic_block.1} parent=11 // pred_check
        %p210 = pneg %p155
      $region30: #{basic_block.1} parent=11 // pred_check_branch
        %212 = sbr.rel (%p210) target = $region32
      $region31: #{basic_block.1} parent=11 // pred_region
        _
      $region32: #{basic_block.1} parent=11 // pred_fallthru
        _
    $region12: #{basic_block.1} parent=5 // pred_fallthru
      _
    %p213 = scmp.lt.s32.totalorder %s12, 4
    // Predicated region
    $region33: #{basic_block.1} parent=5 // pred_check
      %p214 = pneg %p213
    $region34: #{basic_block.1} parent=5 // pred_check_branch
      %216 = sbr.rel (%p214) target = $region36
    $region35: #{basic_block.1} parent=5 // pred_region
      // Predicated region
      $region37: #{basic_block.1} parent=35 // pred_check
        %p217 = pneg %p44
      $region38: #{basic_block.1} parent=35 // pred_check_branch
        %219 = sbr.rel (%p217) target = $region40
      $region39: #{basic_block.1} parent=35 // pred_region
        %p220 = scmp.lt.s32.totalorder %s20, 1
        %s221 = scalar_select %p220, %s20, 1
        %s222 = smul.addr %s221, 3
        %s223 = smul.addr %s222, 8
        %s224 = scalar_lea.vmem %s0, %s223
      $region40: #{basic_block.1} parent=35 // pred_fallthru
        _
    $region36: #{basic_block.1} parent=5 // pred_fallthru
      _
    %p225 = scmp.le.s32.totalorder 1, %s12
    %p226 = scmp.lt.s32.totalorder %s12, 5
    %p227 = pnand %p225, %p226
    %p228 = pneg %p227
    // Predicated region
    $region41: #{basic_block.1} parent=5 // pred_check
      _
    $region42: #{basic_block.1} parent=5 // pred_check_branch
      %230 = sbr.rel (%p227) target = $region44
    $region43: #{basic_block.1} parent=5 // pred_region
      %s231 = ssub.s32 %s12, 1
      %p232 = scmp.lt.s32.totalorder %s22, 1
      %s233 = scalar_select %p232, %s22, 1
      %s234 = smul.addr %s233, 3
      %s235 = smul.addr %s234, 8
      %s236 = scalar_lea.vmem %s0, %s235
      %p237 = pneg %p50
      %p238 = pneg %p47
      %p239 = pneg %p71
      %p240 = pneg %p68
      %p241 = pneg %p92
      %p242 = pneg %p89
      %p243 = pneg %p113
      %p244 = pneg %p110
      %p245 = pneg %p134
      %p246 = pneg %p131
      %p247 = pneg %p155
      %p248 = pneg %p152
      %p249 = pneg %p183
      %p250 = pneg %p180
      %s251 = smul.u32 %s21, %s22
      %p252 = scmp.lt.s32.totalorder %s251, 1
      %s253 = scalar_select %p252, %s251, 1
      %s254 = smul.addr %s253, 2
      %s255 = smul.addr %s254, 8
      %s256 = scalar_lea.vmem %s6, %s255
      %p257 = scmp.lt.s32.totalorder %s22, 1
      %s258 = scalar_select %p257, %s22, 1
      %s259 = smul.addr %s258, 3
      %s260 = smul.addr %s259, 8
      %s261 = scalar_lea.vmem %s0, %s260
      %s262 = smul.u32 %s21, %s22
      %p263 = scmp.lt.s32.totalorder %s262, 1
      %s264 = scalar_select %p263, %s262, 1
      %s265 = smul.addr %s264, 2
      %s266 = smul.addr %s265, 8
      %s267 = scalar_lea.vmem %s6, %s266
      %s268 = smul.u32 %s21, %s22
      %p269 = scmp.eq.s32.totalorder %s21, 0
      // Predicated region
      $region45: #{basic_block.1} parent=43 // pred_check
        %p270 = pneg %p269
      $region46: #{basic_block.1} parent=43 // pred_check_branch
        %272 = sbr.rel (%p270) target = $region48
      $region47: #{basic_block.1} parent=43 // pred_region
        %p273 = scmp.eq.s32.totalorder %s22, 0
        // Predicated region
        $region49: #{basic_block.1} parent=47 // pred_check
          %p274 = pneg %p273
        $region50: #{basic_block.1} parent=47 // pred_check_branch
          %276 = sbr.rel (%p274) target = $region52
        $region51: #{basic_block.1} parent=47 // pred_region
          %vm277 = vcmask 7168
          %278 = vst.msk [vmem:[#allocation3] sm:$0xff] %vm277, 0.0
          %279 = vst.msk [vmem:[#allocation4] sm:$0xff] %vm277, 0.0
        $region52: #{basic_block.1} parent=47 // pred_fallthru
          _
        %v280 = vlaneseq
        %v281 = vand.u32 %v280, 127
        %v282 = vadd.s32 %v281, 128
        %vm283 = vcmp.lt.s32.totalorder %v281, 0
        %v284 = vsub.s32 0, %v281
        %v285 = vsel %vm283, %v284, %v281
        %v286 = vshrl.u32 %v285, 4
        %v287 = vand.u32 %v285, 15
        %v288 = vsub.s32 0, %v287
        %v289 = vsel %vm283, %v288, %v287
        %vm290 = vcmp.lt.s32.totalorder %v282, 0
        %v291 = vsub.s32 0, %v282
        %v292 = vsel %vm290, %v291, %v282
        %v293 = vshrl.u32 %v292, 4
        %v294 = vand.u32 %v292, 15
        %v295 = vsub.s32 0, %v294
        %v296 = vsel %vm290, %v295, %v294
        %vm297 = vcmp.ne.s32.totalorder %v289, 0
        %vm298 = vcmp.ne.s32.totalorder %v296, 0
        %vm299 = vcmp.lt.s32.totalorder %v289, 0
        %vm300 = vcmp.lt.s32.totalorder %v296, 0
        %vm301 = vmand %vm299, %vm297
        %vm302 = vmand %vm300, %vm298
        %v303 = vadd.s32 %v289, 16
        %v304 = vadd.s32 %v296, 16
        %v305 = vsel %vm301, %v303, %v289
        %v306 = vsel %vm302, %v304, %v296
        %vm307 = vcmp.ge.s32.totalorder %v305, 1
        %vm308 = vcmp.ge.s32.totalorder %v306, 1
        %vm309 = vcmp.le.s32.totalorder %v305, 14
        %vm310 = vcmp.le.s32.totalorder %v306, 14
        %v311 = vld [vmem:[%s261] sm:$0xff]
        %v312 = vld [vmem:[%s261 + $0x8] sm:$0xff]
        %v313 = vsel %vm307, %v311, 0.0
        %v314 = vsel %vm308, %v312, 0.0
        %v315 = vld [vmem:[%s1] sm:$0xff]
        %v316 = vld [vmem:[%s261 + $0x10] sm:$0xff]
        %s317 = scalar_lea.vmem %s1, 8
        %v318 = vld [vmem:[%s317] sm:$0xff]
        %322 = vrot.lane.b32.xlu0 %v311, 127
        %v323 = vpop.permute.xlu0 %322
        %324 = vrot.lane.b32.xlu0 %v312, 127
        %v325 = vpop.permute.xlu0 %324
        %326 = vrot.lane.b32.xlu0 %v316, 127
        %v327 = vpop.permute.xlu0 %326
        %vm328 = vcmask 1039360
        %v329 = vsel %vm328, %v323, %v325
        %v330 = vsel %vm328, %v325, %v327
        %vm333 = vcmask 64512
        %v335 = vsel %vm333, %v318, 0
        %337 = vmatprep.subr.mxu0 %v330
        %338 = vmatpush1.msra.mxu0 %v329
        %339 = vmatprep.subr.mxu0 0.0
        %340 = vmatpush1.msra.mxu0 0.0
        %341 = vmatprep.subr.mxu0 0.0
        %342 = vmatpush1.msra.mxu0 0.0
        %343 = vmatprep.subr.mxu0 0.0
        %344 = vmatpush1.msra.mxu0 0.0
        %345 = vmatprep.subr.mxu0 0.0
        %346 = vmatpush1.msra.mxu0 0.0
        %347 = vmatprep.subr.mxu0 0.0
        %348 = vmatpush1.msra.mxu0 0.0
        %349 = vmatprep.subr.mxu0 0.0
        %350 = vmatpush1.msra.mxu0 0.0
        %351 = vmatprep.subr.mxu0 0.0
        %352 = vmatpush1.msra.mxu0 0.0
        %353 = vmatprep.subr.mxu0 0.0
        %354 = vmatpush1.msra.mxu0 0.0
        %355 = vmatprep.subr.mxu0 0.0
        %356 = vmatpush1.msra.mxu0 0.0
        %357 = vmatprep.subr.mxu0 0.0
        %358 = vmatpush1.msra.mxu0 0.0
        %359 = vmatprep.subr.mxu0 0.0
        %360 = vmatpush1.msra.mxu0 0.0
        %361 = vmatprep.subr.mxu0 0.0
        %362 = vmatpush1.msra.mxu0 0.0
        %363 = vmatprep.subr.mxu0 0.0
        %364 = vmatpush1.msra.mxu0 0.0
        %365 = vmatprep.subr.mxu0 0.0
        %366 = vmatpush1.msra.mxu0 0.0
        %367 = vmatprep.subr.mxu0 0.0
        %368 = vmatpush1.msra.mxu0 0.0
        %369 = vmatprep.subr.mxu0 0.0
        %370 = vmatpush1.msra.mxu0 0.0
        %371 = vmatprep.subr.mxu0 0.0
        %372 = vmatpush1.msra.mxu0 0.0
        %373 = vmatprep.subr.mxu0 0.0
        %374 = vmatpush1.msra.mxu0 0.0
        %375 = vmatprep.subr.mxu0 0.0
        %376 = vmatpush1.msra.mxu0 0.0
        %377 = vmatprep.subr.mxu0 0.0
        %378 = vmatpush1.msra.mxu0 0.0
        %379 = vmatprep.subr.mxu0 0.0
        %380 = vmatpush1.msra.mxu0 0.0
        %381 = vmatprep.subr.mxu0 0.0
        %382 = vmatpush1.msra.mxu0 0.0
        %383 = vmatprep.subr.mxu0 0.0
        %384 = vmatpush1.msra.mxu0 0.0
        %385 = vmatprep.subr.mxu0 0.0
        %386 = vmatpush1.msra.mxu0 0.0
        %387 = vmatprep.subr.mxu0 0.0
        %388 = vmatpush1.msra.mxu0 0.0
        %389 = vmatprep.subr.mxu0 0.0
        %390 = vmatpush1.msra.mxu0 0.0
        %391 = vmatprep.subr.mxu0 0.0
        %392 = vmatpush1.msra.mxu0 0.0
        %393 = vmatprep.subr.mxu0 0.0
        %394 = vmatpush1.msra.mxu0 0.0
        %395 = vmatprep.subr.mxu0 0.0
        %396 = vmatpush1.msra.mxu0 0.0
        %397 = vmatprep.subr.mxu0 0.0
        %398 = vmatpush1.msra.mxu0 0.0
        %399 = vmatprep.subr.mxu0 0.0
        %400 = vmatpush1.msra.mxu0 0.0
        %401 = vmatprep.mubr.f32.mxu0 0.0
        %402 = vmatmul.mubr.f32.gmra.mrb[0].mxu0 %v335
        %v403 = vpop.f32.mrb[0].mxu0
        %v404 = vadd.f32 0.0, %v403
        %v405 = vpop.f32.mrb[0].mxu0
        %v406 = vadd.f32 0.0, %v405
        %407 = vdwg.mxu0
        %v409 = vsel %vm333, %v315, 0
        %411 = vmatprep.subr.mxu0 %v314
        %412 = vmatpush1.msra.mxu0 %v313
        %413 = vmatprep.subr.mxu0 0.0
        %414 = vmatpush1.msra.mxu0 0.0
        %415 = vmatprep.subr.mxu0 0.0
        %416 = vmatpush1.msra.mxu0 0.0
        %417 = vmatprep.subr.mxu0 0.0
        %418 = vmatpush1.msra.mxu0 0.0
        %419 = vmatprep.subr.mxu0 0.0
        %420 = vmatpush1.msra.mxu0 0.0
        %421 = vmatprep.subr.mxu0 0.0
        %422 = vmatpush1.msra.mxu0 0.0
        %423 = vmatprep.subr.mxu0 0.0
        %424 = vmatpush1.msra.mxu0 0.0
        %425 = vmatprep.subr.mxu0 0.0
        %426 = vmatpush1.msra.mxu0 0.0
        %427 = vmatprep.subr.mxu0 0.0
        %428 = vmatpush1.msra.mxu0 0.0
        %429 = vmatprep.subr.mxu0 0.0
        %430 = vmatpush1.msra.mxu0 0.0
        %431 = vmatprep.subr.mxu0 0.0
        %432 = vmatpush1.msra.mxu0 0.0
        %433 = vmatprep.subr.mxu0 0.0
        %434 = vmatpush1.msra.mxu0 0.0
        %435 = vmatprep.subr.mxu0 0.0
        %436 = vmatpush1.msra.mxu0 0.0
        %437 = vmatprep.subr.mxu0 0.0
        %438 = vmatpush1.msra.mxu0 0.0
        %439 = vmatprep.subr.mxu0 0.0
        %440 = vmatpush1.msra.mxu0 0.0
        %441 = vmatprep.subr.mxu0 0.0
        %442 = vmatpush1.msra.mxu0 0.0
        %443 = vmatprep.subr.mxu0 0.0
        %444 = vmatpush1.msra.mxu0 0.0
        %445 = vmatprep.subr.mxu0 0.0
        %446 = vmatpush1.msra.mxu0 0.0
        %447 = vmatprep.subr.mxu0 0.0
        %448 = vmatpush1.msra.mxu0 0.0
        %449 = vmatprep.subr.mxu0 0.0
        %450 = vmatpush1.msra.mxu0 0.0
        %451 = vmatprep.subr.mxu0 0.0
        %452 = vmatpush1.msra.mxu0 0.0
        %453 = vmatprep.subr.mxu0 0.0
        %454 = vmatpush1.msra.mxu0 0.0
        %455 = vmatprep.subr.mxu0 0.0
        %456 = vmatpush1.msra.mxu0 0.0
        %457 = vmatprep.subr.mxu0 0.0
        %458 = vmatpush1.msra.mxu0 0.0
        %459 = vmatprep.subr.mxu0 0.0
        %460 = vmatpush1.msra.mxu0 0.0
        %461 = vmatprep.subr.mxu0 0.0
        %462 = vmatpush1.msra.mxu0 0.0
        %463 = vmatprep.subr.mxu0 0.0
        %464 = vmatpush1.msra.mxu0 0.0
        %465 = vmatprep.subr.mxu0 0.0
        %466 = vmatpush1.msra.mxu0 0.0
        %467 = vmatprep.subr.mxu0 0.0
        %468 = vmatpush1.msra.mxu0 0.0
        %469 = vmatprep.subr.mxu0 0.0
        %470 = vmatpush1.msra.mxu0 0.0
        %471 = vmatprep.subr.mxu0 0.0
        %472 = vmatpush1.msra.mxu0 0.0
        %473 = vmatprep.subr.mxu0 0.0
        %474 = vmatpush1.msra.mxu0 0.0
        %475 = vmatprep.mubr.f32.mxu0 0.0
        %476 = vmatmul.mubr.f32.gmra.mrb[0].mxu0 %v409
        %v477 = vpop.f32.mrb[0].mxu0
        %v478 = vadd.f32 %v404, %v477
        %v479 = vpop.f32.mrb[0].mxu0
        %v480 = vadd.f32 %v406, %v479
        %481 = vdwg.mxu0
        %482 = vrot.lane.b32.xlu0 %v311, 126
        %v483 = vpop.permute.xlu0 %482
        %484 = vrot.lane.b32.xlu0 %v312, 126
        %v485 = vpop.permute.xlu0 %484
        %486 = vrot.lane.b32.xlu0 %v316, 126
        %v487 = vpop.permute.xlu0 %486
        %vm488 = vcmask 1031168
        %v489 = vsel %vm488, %v483, %v485
        %v490 = vsel %vm488, %v485, %v487
        %v493 = vsel %vm309, %v489, 0.0
        %v494 = vsel %vm310, %v490, 0.0
        %s495 = scalar_lea.vmem %s1, 16
        %v496 = vld [vmem:[%s495] sm:$0xff]
        %v498 = vsel %vm333, %v496, 0
        %500 = vmatprep.subr.mxu0 %v494
        %501 = vmatpush1.msra.mxu0 %v493
        %502 = vmatprep.subr.mxu0 0.0
        %503 = vmatpush1.msra.mxu0 0.0
        %504 = vmatprep.subr.mxu0 0.0
        %505 = vmatpush1.msra.mxu0 0.0
        %506 = vmatprep.subr.mxu0 0.0
        %507 = vmatpush1.msra.mxu0 0.0
        %508 = vmatprep.subr.mxu0 0.0
        %509 = vmatpush1.msra.mxu0 0.0
        %510 = vmatprep.subr.mxu0 0.0
        %511 = vmatpush1.msra.mxu0 0.0
        %512 = vmatprep.subr.mxu0 0.0
        %513 = vmatpush1.msra.mxu0 0.0
        %514 = vmatprep.subr.mxu0 0.0
        %515 = vmatpush1.msra.mxu0 0.0
        %516 = vmatprep.subr.mxu0 0.0
        %517 = vmatpush1.msra.mxu0 0.0
        %518 = vmatprep.subr.mxu0 0.0
        %519 = vmatpush1.msra.mxu0 0.0
        %520 = vmatprep.subr.mxu0 0.0
        %521 = vmatpush1.msra.mxu0 0.0
        %522 = vmatprep.subr.mxu0 0.0
        %523 = vmatpush1.msra.mxu0 0.0
        %524 = vmatprep.subr.mxu0 0.0
        %525 = vmatpush1.msra.mxu0 0.0
        %526 = vmatprep.subr.mxu0 0.0
        %527 = vmatpush1.msra.mxu0 0.0
        %528 = vmatprep.subr.mxu0 0.0
        %529 = vmatpush1.msra.mxu0 0.0
        %530 = vmatprep.subr.mxu0 0.0
        %531 = vmatpush1.msra.mxu0 0.0
        %532 = vmatprep.subr.mxu0 0.0
        %533 = vmatpush1.msra.mxu0 0.0
        %534 = vmatprep.subr.mxu0 0.0
        %535 = vmatpush1.msra.mxu0 0.0
        %536 = vmatprep.subr.mxu0 0.0
        %537 = vmatpush1.msra.mxu0 0.0
        %538 = vmatprep.subr.mxu0 0.0
        %539 = vmatpush1.msra.mxu0 0.0
        %540 = vmatprep.subr.mxu0 0.0
        %541 = vmatpush1.msra.mxu0 0.0
        %542 = vmatprep.subr.mxu0 0.0
        %543 = vmatpush1.msra.mxu0 0.0
        %544 = vmatprep.subr.mxu0 0.0
        %545 = vmatpush1.msra.mxu0 0.0
        %546 = vmatprep.subr.mxu0 0.0
        %547 = vmatpush1.msra.mxu0 0.0
        %548 = vmatprep.subr.mxu0 0.0
        %549 = vmatpush1.msra.mxu0 0.0
        %550 = vmatprep.subr.mxu0 0.0
        %551 = vmatpush1.msra.mxu0 0.0
        %552 = vmatprep.subr.mxu0 0.0
        %553 = vmatpush1.msra.mxu0 0.0
        %554 = vmatprep.subr.mxu0 0.0
        %555 = vmatpush1.msra.mxu0 0.0
        %556 = vmatprep.subr.mxu0 0.0
        %557 = vmatpush1.msra.mxu0 0.0
        %558 = vmatprep.subr.mxu0 0.0
        %559 = vmatpush1.msra.mxu0 0.0
        %560 = vmatprep.subr.mxu0 0.0
        %561 = vmatpush1.msra.mxu0 0.0
        %562 = vmatprep.subr.mxu0 0.0
        %563 = vmatpush1.msra.mxu0 0.0
        %564 = vmatprep.mubr.f32.mxu0 0.0
        %565 = vmatmul.mubr.f32.gmra.mrb[0].mxu0 %v498
        %v566 = vpop.f32.mrb[0].mxu0
        %v567 = vadd.f32 0.0, %v566
        %v568 = vpop.f32.mrb[0].mxu0
        %v569 = vadd.f32 0.0, %v568
        %570 = vdwg.mxu0
        %v571 = vadd.f32 %v478, %v567
        %v572 = vadd.f32 %v480, %v569
        %573 = vrot.lane.b32.xlu0 %v311, 112
        %v574 = vpop.permute.xlu0 %573
        %575 = vrot.lane.b32.xlu0 %v312, 112
        %v576 = vpop.permute.xlu0 %575
        %577 = vrot.lane.b32.xlu0 %v316, 112
        %v578 = vpop.permute.xlu0 %577
        %vm579 = vcmask 916480
        %v580 = vsel %vm579, %v574, %v576
        %v581 = vsel %vm579, %v576, %v578
        %v584 = vsel %vm307, %v580, 0.0
        %v585 = vsel %vm308, %v581, 0.0
        %s586 = scalar_lea.vmem %s1, 24
        %v587 = vld [vmem:[%s586] sm:$0xff]
        %v589 = vsel %vm333, %v587, 0
        %591 = vmatprep.subr.mxu0 %v585
        %592 = vmatpush1.msra.mxu0 %v584
        %593 = vmatprep.subr.mxu0 0.0
        %594 = vmatpush1.msra.mxu0 0.0
        %595 = vmatprep.subr.mxu0 0.0
        %596 = vmatpush1.msra.mxu0 0.0
        %597 = vmatprep.subr.mxu0 0.0
        %598 = vmatpush1.msra.mxu0 0.0
        %599 = vmatprep.subr.mxu0 0.0
        %600 = vmatpush1.msra.mxu0 0.0
        %601 = vmatprep.subr.mxu0 0.0
        %602 = vmatpush1.msra.mxu0 0.0
        %603 = vmatprep.subr.mxu0 0.0
        %604 = vmatpush1.msra.mxu0 0.0
        %605 = vmatprep.subr.mxu0 0.0
        %606 = vmatpush1.msra.mxu0 0.0
        %607 = vmatprep.subr.mxu0 0.0
        %608 = vmatpush1.msra.mxu0 0.0
        %609 = vmatprep.subr.mxu0 0.0
        %610 = vmatpush1.msra.mxu0 0.0
        %611 = vmatprep.subr.mxu0 0.0
        %612 = vmatpush1.msra.mxu0 0.0
        %613 = vmatprep.subr.mxu0 0.0
        %614 = vmatpush1.msra.mxu0 0.0
        %615 = vmatprep.subr.mxu0 0.0
        %616 = vmatpush1.msra.mxu0 0.0
        %617 = vmatprep.subr.mxu0 0.0
        %618 = vmatpush1.msra.mxu0 0.0
        %619 = vmatprep.subr.mxu0 0.0
        %620 = vmatpush1.msra.mxu0 0.0
        %621 = vmatprep.subr.mxu0 0.0
        %622 = vmatpush1.msra.mxu0 0.0
        %623 = vmatprep.subr.mxu0 0.0
        %624 = vmatpush1.msra.mxu0 0.0
        %625 = vmatprep.subr.mxu0 0.0
        %626 = vmatpush1.msra.mxu0 0.0
        %627 = vmatprep.subr.mxu0 0.0
        %628 = vmatpush1.msra.mxu0 0.0
        %629 = vmatprep.subr.mxu0 0.0
        %630 = vmatpush1.msra.mxu0 0.0
        %631 = vmatprep.subr.mxu0 0.0
        %632 = vmatpush1.msra.mxu0 0.0
        %633 = vmatprep.subr.mxu0 0.0
        %634 = vmatpush1.msra.mxu0 0.0
        %635 = vmatprep.subr.mxu0 0.0
        %636 = vmatpush1.msra.mxu0 0.0
        %637 = vmatprep.subr.mxu0 0.0
        %638 = vmatpush1.msra.mxu0 0.0
        %639 = vmatprep.subr.mxu0 0.0
        %640 = vmatpush1.msra.mxu0 0.0
        %641 = vmatprep.subr.mxu0 0.0
        %642 = vmatpush1.msra.mxu0 0.0
        %643 = vmatprep.subr.mxu0 0.0
        %644 = vmatpush1.msra.mxu0 0.0
        %645 = vmatprep.subr.mxu0 0.0
        %646 = vmatpush1.msra.mxu0 0.0
        %647 = vmatprep.subr.mxu0 0.0
        %648 = vmatpush1.msra.mxu0 0.0
        %649 = vmatprep.subr.mxu0 0.0
        %650 = vmatpush1.msra.mxu0 0.0
        %651 = vmatprep.subr.mxu0 0.0
        %652 = vmatpush1.msra.mxu0 0.0
        %653 = vmatprep.subr.mxu0 0.0
        %654 = vmatpush1.msra.mxu0 0.0
        %655 = vmatprep.mubr.f32.mxu0 0.0
        %656 = vmatmul.mubr.f32.gmra.mrb[0].mxu0 %v589
        %v657 = vpop.f32.mrb[0].mxu0
        %v658 = vadd.f32 0.0, %v657
        %v659 = vpop.f32.mrb[0].mxu0
        %v660 = vadd.f32 0.0, %v659
        %661 = vdwg.mxu0
        %v662 = vadd.f32 %v571, %v658
        %v663 = vadd.f32 %v572, %v660
        %s664 = scalar_lea.vmem %s1, 32
        %v665 = vld [vmem:[%s664] sm:$0xff]
        %666 = vrot.lane.b32.xlu0 %v311, 111
        %v667 = vpop.permute.xlu0 %666
        %668 = vrot.lane.b32.xlu0 %v312, 111
        %v669 = vpop.permute.xlu0 %668
        %670 = vrot.lane.b32.xlu0 %v316, 111
        %v671 = vpop.permute.xlu0 %670
        %vm672 = vcmask 908288
        %v673 = vsel %vm672, %v667, %v669
        %v674 = vsel %vm672, %v669, %v671
        %v678 = vsel %vm333, %v665, 0
        %680 = vmatprep.subr.mxu0 %v674
        %681 = vmatpush1.msra.mxu0 %v673
        %682 = vmatprep.subr.mxu0 0.0
        %683 = vmatpush1.msra.mxu0 0.0
        %684 = vmatprep.subr.mxu0 0.0
        %685 = vmatpush1.msra.mxu0 0.0
        %686 = vmatprep.subr.mxu0 0.0
        %687 = vmatpush1.msra.mxu0 0.0
        %688 = vmatprep.subr.mxu0 0.0
        %689 = vmatpush1.msra.mxu0 0.0
        %690 = vmatprep.subr.mxu0 0.0
        %691 = vmatpush1.msra.mxu0 0.0
        %692 = vmatprep.subr.mxu0 0.0
        %693 = vmatpush1.msra.mxu0 0.0
        %694 = vmatprep.subr.mxu0 0.0
        %695 = vmatpush1.msra.mxu0 0.0
        %696 = vmatprep.subr.mxu0 0.0
        %697 = vmatpush1.msra.mxu0 0.0
        %698 = vmatprep.subr.mxu0 0.0
        %699 = vmatpush1.msra.mxu0 0.0
        %700 = vmatprep.subr.mxu0 0.0
        %701 = vmatpush1.msra.mxu0 0.0
        %702 = vmatprep.subr.mxu0 0.0
        %703 = vmatpush1.msra.mxu0 0.0
        %704 = vmatprep.subr.mxu0 0.0
        %705 = vmatpush1.msra.mxu0 0.0
        %706 = vmatprep.subr.mxu0 0.0
        %707 = vmatpush1.msra.mxu0 0.0
        %708 = vmatprep.subr.mxu0 0.0
        %709 = vmatpush1.msra.mxu0 0.0
        %710 = vmatprep.subr.mxu0 0.0
        %711 = vmatpush1.msra.mxu0 0.0
        %712 = vmatprep.subr.mxu0 0.0
        %713 = vmatpush1.msra.mxu0 0.0
        %714 = vmatprep.subr.mxu0 0.0
        %715 = vmatpush1.msra.mxu0 0.0
        %716 = vmatprep.subr.mxu0 0.0
        %717 = vmatpush1.msra.mxu0 0.0
        %718 = vmatprep.subr.mxu0 0.0
        %719 = vmatpush1.msra.mxu0 0.0
        %720 = vmatprep.subr.mxu0 0.0
        %721 = vmatpush1.msra.mxu0 0.0
        %722 = vmatprep.subr.mxu0 0.0
        %723 = vmatpush1.msra.mxu0 0.0
        %724 = vmatprep.subr.mxu0 0.0
        %725 = vmatpush1.msra.mxu0 0.0
        %726 = vmatprep.subr.mxu0 0.0
        %727 = vmatpush1.msra.mxu0 0.0
        %728 = vmatprep.subr.mxu0 0.0
        %729 = vmatpush1.msra.mxu0 0.0
        %730 = vmatprep.subr.mxu0 0.0
        %731 = vmatpush1.msra.mxu0 0.0
        %732 = vmatprep.subr.mxu0 0.0
        %733 = vmatpush1.msra.mxu0 0.0
        %734 = vmatprep.subr.mxu0 0.0
        %735 = vmatpush1.msra.mxu0 0.0
        %736 = vmatprep.subr.mxu0 0.0
        %737 = vmatpush1.msra.mxu0 0.0
        %738 = vmatprep.subr.mxu0 0.0
        %739 = vmatpush1.msra.mxu0 0.0
        %740 = vmatprep.subr.mxu0 0.0
        %741 = vmatpush1.msra.mxu0 0.0
        %742 = vmatprep.subr.mxu0 0.0
        %743 = vmatpush1.msra.mxu0 0.0
        %744 = vmatprep.mubr.f32.mxu0 0.0
        %745 = vmatmul.mubr.f32.gmra.mrb[0].mxu0 %v678
        %v746 = vpop.f32.mrb[0].mxu0
        %v747 = vadd.f32 0.0, %v746
        %v748 = vpop.f32.mrb[0].mxu0
        %v749 = vadd.f32 0.0, %v748
        %750 = vdwg.mxu0
        %v751 = vadd.f32 %v662, %v747
        %v752 = vadd.f32 %v663, %v749
        %753 = vrot.lane.b32.xlu0 %v311, 110
        %v754 = vpop.permute.xlu0 %753
        %755 = vrot.lane.b32.xlu0 %v312, 110
        %v756 = vpop.permute.xlu0 %755
        %757 = vrot.lane.b32.xlu0 %v316, 110
        %v758 = vpop.permute.xlu0 %757
        %vm759 = vcmask 900096
        %v760 = vsel %vm759, %v754, %v756
        %v761 = vsel %vm759, %v756, %v758
        %v764 = vsel %vm309, %v760, 0.0
        %v765 = vsel %vm310, %v761, 0.0
        %s766 = scalar_lea.vmem %s1, 40
        %v767 = vld [vmem:[%s766] sm:$0xff]
        %v769 = vsel %vm333, %v767, 0
        %771 = vmatprep.subr.mxu0 %v765
        %772 = vmatpush1.msra.mxu0 %v764
        %773 = vmatprep.subr.mxu0 0.0
        %774 = vmatpush1.msra.mxu0 0.0
        %775 = vmatprep.subr.mxu0 0.0
        %776 = vmatpush1.msra.mxu0 0.0
        %777 = vmatprep.subr.mxu0 0.0
        %778 = vmatpush1.msra.mxu0 0.0
        %779 = vmatprep.subr.mxu0 0.0
        %780 = vmatpush1.msra.mxu0 0.0
        %781 = vmatprep.subr.mxu0 0.0
        %782 = vmatpush1.msra.mxu0 0.0
        %783 = vmatprep.subr.mxu0 0.0
        %784 = vmatpush1.msra.mxu0 0.0
        %785 = vmatprep.subr.mxu0 0.0
        %786 = vmatpush1.msra.mxu0 0.0
        %787 = vmatprep.subr.mxu0 0.0
        %788 = vmatpush1.msra.mxu0 0.0
        %789 = vmatprep.subr.mxu0 0.0
        %790 = vmatpush1.msra.mxu0 0.0
        %791 = vmatprep.subr.mxu0 0.0
        %792 = vmatpush1.msra.mxu0 0.0
        %793 = vmatprep.subr.mxu0 0.0
        %794 = vmatpush1.msra.mxu0 0.0
        %795 = vmatprep.subr.mxu0 0.0
        %796 = vmatpush1.msra.mxu0 0.0
        %797 = vmatprep.subr.mxu0 0.0
        %798 = vmatpush1.msra.mxu0 0.0
        %799 = vmatprep.subr.mxu0 0.0
        %800 = vmatpush1.msra.mxu0 0.0
        %801 = vmatprep.subr.mxu0 0.0
        %802 = vmatpush1.msra.mxu0 0.0
        %803 = vmatprep.subr.mxu0 0.0
        %804 = vmatpush1.msra.mxu0 0.0
        %805 = vmatprep.subr.mxu0 0.0
        %806 = vmatpush1.msra.mxu0 0.0
        %807 = vmatprep.subr.mxu0 0.0
        %808 = vmatpush1.msra.mxu0 0.0
        %809 = vmatprep.subr.mxu0 0.0
        %810 = vmatpush1.msra.mxu0 0.0
        %811 = vmatprep.subr.mxu0 0.0
        %812 = vmatpush1.msra.mxu0 0.0
        %813 = vmatprep.subr.mxu0 0.0
        %814 = vmatpush1.msra.mxu0 0.0
        %815 = vmatprep.subr.mxu0 0.0
        %816 = vmatpush1.msra.mxu0 0.0
        %817 = vmatprep.subr.mxu0 0.0
        %818 = vmatpush1.msra.mxu0 0.0
        %819 = vmatprep.subr.mxu0 0.0
        %820 = vmatpush1.msra.mxu0 0.0
        %821 = vmatprep.subr.mxu0 0.0
        %822 = vmatpush1.msra.mxu0 0.0
        %823 = vmatprep.subr.mxu0 0.0
        %824 = vmatpush1.msra.mxu0 0.0
        %825 = vmatprep.subr.mxu0 0.0
        %826 = vmatpush1.msra.mxu0 0.0
        %827 = vmatprep.subr.mxu0 0.0
        %828 = vmatpush1.msra.mxu0 0.0
        %829 = vmatprep.subr.mxu0 0.0
        %830 = vmatpush1.msra.mxu0 0.0
        %831 = vmatprep.subr.mxu0 0.0
        %832 = vmatpush1.msra.mxu0 0.0
        %833 = vmatprep.subr.mxu0 0.0
        %834 = vmatpush1.msra.mxu0 0.0
        %835 = vmatprep.mubr.f32.mxu0 0.0
        %836 = vmatmul.mubr.f32.gmra.mrb[0].mxu0 %v769
        %v837 = vpop.f32.mrb[0].mxu0
        %v838 = vadd.f32 0.0, %v837
        %v839 = vpop.f32.mrb[0].mxu0
        %v840 = vadd.f32 0.0, %v839
        %841 = vdwg.mxu0
        %v842 = vadd.f32 %v751, %v838
        %v843 = vadd.f32 %v752, %v840
        %844 = vrot.lane.b32.xlu0 %v311, 96
        %v845 = vpop.permute.xlu0 %844
        %846 = vrot.lane.b32.xlu0 %v312, 96
        %v847 = vpop.permute.xlu0 %846
        %848 = vrot.lane.b32.xlu0 %v316, 96
        %v849 = vpop.permute.xlu0 %848
        %vm850 = vcmask 785408
        %v851 = vsel %vm850, %v845, %v847
        %v852 = vsel %vm850, %v847, %v849
        %v855 = vsel %vm307, %v851, 0.0
        %v856 = vsel %vm308, %v852, 0.0
        %s857 = scalar_lea.vmem %s1, 48
        %v858 = vld [vmem:[%s857] sm:$0xff]
        %v860 = vsel %vm333, %v858, 0
        %862 = vmatprep.subr.mxu0 %v856
        %863 = vmatpush1.msra.mxu0 %v855
        %864 = vmatprep.subr.mxu0 0.0
        %865 = vmatpush1.msra.mxu0 0.0
        %866 = vmatprep.subr.mxu0 0.0
        %867 = vmatpush1.msra.mxu0 0.0
        %868 = vmatprep.subr.mxu0 0.0
        %869 = vmatpush1.msra.mxu0 0.0
        %870 = vmatprep.subr.mxu0 0.0
        %871 = vmatpush1.msra.mxu0 0.0
        %872 = vmatprep.subr.mxu0 0.0
        %873 = vmatpush1.msra.mxu0 0.0
        %874 = vmatprep.subr.mxu0 0.0
        %875 = vmatpush1.msra.mxu0 0.0
        %876 = vmatprep.subr.mxu0 0.0
        %877 = vmatpush1.msra.mxu0 0.0
        %878 = vmatprep.subr.mxu0 0.0
        %879 = vmatpush1.msra.mxu0 0.0
        %880 = vmatprep.subr.mxu0 0.0
        %881 = vmatpush1.msra.mxu0 0.0
        %882 = vmatprep.subr.mxu0 0.0
        %883 = vmatpush1.msra.mxu0 0.0
        %884 = vmatprep.subr.mxu0 0.0
        %885 = vmatpush1.msra.mxu0 0.0
        %886 = vmatprep.subr.mxu0 0.0
        %887 = vmatpush1.msra.mxu0 0.0
        %888 = vmatprep.subr.mxu0 0.0
        %889 = vmatpush1.msra.mxu0 0.0
        %890 = vmatprep.subr.mxu0 0.0
        %891 = vmatpush1.msra.mxu0 0.0
        %892 = vmatprep.subr.mxu0 0.0
        %893 = vmatpush1.msra.mxu0 0.0
        %894 = vmatprep.subr.mxu0 0.0
        %895 = vmatpush1.msra.mxu0 0.0
        %896 = vmatprep.subr.mxu0 0.0
        %897 = vmatpush1.msra.mxu0 0.0
        %898 = vmatprep.subr.mxu0 0.0
        %899 = vmatpush1.msra.mxu0 0.0
        %900 = vmatprep.subr.mxu0 0.0
        %901 = vmatpush1.msra.mxu0 0.0
        %902 = vmatprep.subr.mxu0 0.0
        %903 = vmatpush1.msra.mxu0 0.0
        %904 = vmatprep.subr.mxu0 0.0
        %905 = vmatpush1.msra.mxu0 0.0
        %906 = vmatprep.subr.mxu0 0.0
        %907 = vmatpush1.msra.mxu0 0.0
        %908 = vmatprep.subr.mxu0 0.0
        %909 = vmatpush1.msra.mxu0 0.0
        %910 = vmatprep.subr.mxu0 0.0
        %911 = vmatpush1.msra.mxu0 0.0
        %912 = vmatprep.subr.mxu0 0.0
        %913 = vmatpush1.msra.mxu0 0.0
        %914 = vmatprep.subr.mxu0 0.0
        %915 = vmatpush1.msra.mxu0 0.0
        %916 = vmatprep.subr.mxu0 0.0
        %917 = vmatpush1.msra.mxu0 0.0
        %918 = vmatprep.subr.mxu0 0.0
        %919 = vmatpush1.msra.mxu0 0.0
        %920 = vmatprep.subr.mxu0 0.0
        %921 = vmatpush1.msra.mxu0 0.0
        %922 = vmatprep.subr.mxu0 0.0
        %923 = vmatpush1.msra.mxu0 0.0
        %924 = vmatprep.subr.mxu0 0.0
        %925 = vmatpush1.msra.mxu0 0.0
        %926 = vmatprep.mubr.f32.mxu0 0.0
        %927 = vmatmul.mubr.f32.gmra.mrb[0].mxu0 %v860
        %v928 = vpop.f32.mrb[0].mxu0
        %v929 = vadd.f32 0.0, %v928
        %v930 = vpop.f32.mrb[0].mxu0
        %v931 = vadd.f32 0.0, %v930
        %932 = vdwg.mxu0
        %v933 = vadd.f32 %v842, %v929
        %v934 = vadd.f32 %v843, %v931
        %s935 = scalar_lea.vmem %s1, 56
        %v936 = vld [vmem:[%s935] sm:$0xff]
        %937 = vrot.lane.b32.xlu0 %v311, 95
        %v938 = vpop.permute.xlu0 %937
        %939 = vrot.lane.b32.xlu0 %v312, 95
        %v940 = vpop.permute.xlu0 %939
        %941 = vrot.lane.b32.xlu0 %v316, 95
        %v942 = vpop.permute.xlu0 %941
        %vm943 = vcmask 777216
        %v944 = vsel %vm943, %v938, %v940
        %v945 = vsel %vm943, %v940, %v942
        %v949 = vsel %vm333, %v936, 0
        %951 = vmatprep.subr.mxu0 %v945
        %952 = vmatpush1.msra.mxu0 %v944
        %953 = vmatprep.subr.mxu0 0.0
        %954 = vmatpush1.msra.mxu0 0.0
        %955 = vmatprep.subr.mxu0 0.0
        %956 = vmatpush1.msra.mxu0 0.0
        %957 = vmatprep.subr.mxu0 0.0
        %958 = vmatpush1.msra.mxu0 0.0
        %959 = vmatprep.subr.mxu0 0.0
        %960 = vmatpush1.msra.mxu0 0.0
        %961 = vmatprep.subr.mxu0 0.0
        %962 = vmatpush1.msra.mxu0 0.0
        %963 = vmatprep.subr.mxu0 0.0
        %964 = vmatpush1.msra.mxu0 0.0
        %965 = vmatprep.subr.mxu0 0.0
        %966 = vmatpush1.msra.mxu0 0.0
        %967 = vmatprep.subr.mxu0 0.0
        %968 = vmatpush1.msra.mxu0 0.0
        %969 = vmatprep.subr.mxu0 0.0
        %970 = vmatpush1.msra.mxu0 0.0
        %971 = vmatprep.subr.mxu0 0.0
        %972 = vmatpush1.msra.mxu0 0.0
        %973 = vmatprep.subr.mxu0 0.0
        %974 = vmatpush1.msra.mxu0 0.0
        %975 = vmatprep.subr.mxu0 0.0
        %976 = vmatpush1.msra.mxu0 0.0
        %977 = vmatprep.subr.mxu0 0.0
        %978 = vmatpush1.msra.mxu0 0.0
        %979 = vmatprep.subr.mxu0 0.0
        %980 = vmatpush1.msra.mxu0 0.0
        %981 = vmatprep.subr.mxu0 0.0
        %982 = vmatpush1.msra.mxu0 0.0
        %983 = vmatprep.subr.mxu0 0.0
        %984 = vmatpush1.msra.mxu0 0.0
        %985 = vmatprep.subr.mxu0 0.0
        %986 = vmatpush1.msra.mxu0 0.0
        %987 = vmatprep.subr.mxu0 0.0
        %988 = vmatpush1.msra.mxu0 0.0
        %989 = vmatprep.subr.mxu0 0.0
        %990 = vmatpush1.msra.mxu0 0.0
        %991 = vmatprep.subr.mxu0 0.0
        %992 = vmatpush1.msra.mxu0 0.0
        %993 = vmatprep.subr.mxu0 0.0
        %994 = vmatpush1.msra.mxu0 0.0
        %995 = vmatprep.subr.mxu0 0.0
        %996 = vmatpush1.msra.mxu0 0.0
        %997 = vmatprep.subr.mxu0 0.0
        %998 = vmatpush1.msra.mxu0 0.0
        %999 = vmatprep.subr.mxu0 0.0
        %1000 = vmatpush1.msra.mxu0 0.0
        %1001 = vmatprep.subr.mxu0 0.0
        %1002 = vmatpush1.msra.mxu0 0.0
        %1003 = vmatprep.subr.mxu0 0.0
        %1004 = vmatpush1.msra.mxu0 0.0
        %1005 = vmatprep.subr.mxu0 0.0
        %1006 = vmatpush1.msra.mxu0 0.0
        %1007 = vmatprep.subr.mxu0 0.0
        %1008 = vmatpush1.msra.mxu0 0.0
        %1009 = vmatprep.subr.mxu0 0.0
        %1010 = vmatpush1.msra.mxu0 0.0
        %1011 = vmatprep.subr.mxu0 0.0
        %1012 = vmatpush1.msra.mxu0 0.0
        %1013 = vmatprep.subr.mxu0 0.0
        %1014 = vmatpush1.msra.mxu0 0.0
        %1015 = vmatprep.mubr.f32.mxu0 0.0
        %1016 = vmatmul.mubr.f32.gmra.mrb[0].mxu0 %v949
        %v1017 = vpop.f32.mrb[0].mxu0
        %v1018 = vadd.f32 0.0, %v1017
        %v1019 = vpop.f32.mrb[0].mxu0
        %v1020 = vadd.f32 0.0, %v1019
        %1021 = vdwg.mxu0
        %v1022 = vadd.f32 %v933, %v1018
        %v1023 = vadd.f32 %v934, %v1020
        %1024 = vrot.lane.b32.xlu0 %v311, 94
        %v1025 = vpop.permute.xlu0 %1024
        %1026 = vrot.lane.b32.xlu0 %v312, 94
        %v1027 = vpop.permute.xlu0 %1026
        %1028 = vrot.lane.b32.xlu0 %v316, 94
        %v1029 = vpop.permute.xlu0 %1028
        %vm1030 = vcmask 769024
        %v1031 = vsel %vm1030, %v1025, %v1027
        %v1032 = vsel %vm1030, %v1027, %v1029
        %v1035 = vsel %vm309, %v1031, 0.0
        %v1036 = vsel %vm310, %v1032, 0.0
        %s1037 = scalar_lea.vmem %s1, 64
        %v1038 = vld [vmem:[%s1037] sm:$0xff]
        %v1040 = vsel %vm333, %v1038, 0
        %1042 = vmatprep.subr.mxu0 %v1036
        %1043 = vmatpush1.msra.mxu0 %v1035
        %1044 = vmatprep.subr.mxu0 0.0
        %1045 = vmatpush1.msra.mxu0 0.0
        %1046 = vmatprep.subr.mxu0 0.0
        %1047 = vmatpush1.msra.mxu0 0.0
        %1048 = vmatprep.subr.mxu0 0.0
        %1049 = vmatpush1.msra.mxu0 0.0
        %1050 = vmatprep.subr.mxu0 0.0
        %1051 = vmatpush1.msra.mxu0 0.0
        %1052 = vmatprep.subr.mxu0 0.0
        %1053 = vmatpush1.msra.mxu0 0.0
        %1054 = vmatprep.subr.mxu0 0.0
        %1055 = vmatpush1.msra.mxu0 0.0
        %1056 = vmatprep.subr.mxu0 0.0
        %1057 = vmatpush1.msra.mxu0 0.0
        %1058 = vmatprep.subr.mxu0 0.0
        %1059 = vmatpush1.msra.mxu0 0.0
        %1060 = vmatprep.subr.mxu0 0.0
        %1061 = vmatpush1.msra.mxu0 0.0
        %1062 = vmatprep.subr.mxu0 0.0
        %1063 = vmatpush1.msra.mxu0 0.0
        %1064 = vmatprep.subr.mxu0 0.0
        %1065 = vmatpush1.msra.mxu0 0.0
        %1066 = vmatprep.subr.mxu0 0.0
        %1067 = vmatpush1.msra.mxu0 0.0
        %1068 = vmatprep.subr.mxu0 0.0
        %1069 = vmatpush1.msra.mxu0 0.0
        %1070 = vmatprep.subr.mxu0 0.0
        %1071 = vmatpush1.msra.mxu0 0.0
        %1072 = vmatprep.subr.mxu0 0.0
        %1073 = vmatpush1.msra.mxu0 0.0
        %1074 = vmatprep.subr.mxu0 0.0
        %1075 = vmatpush1.msra.mxu0 0.0
        %1076 = vmatprep.subr.mxu0 0.0
        %1077 = vmatpush1.msra.mxu0 0.0
        %1078 = vmatprep.subr.mxu0 0.0
        %1079 = vmatpush1.msra.mxu0 0.0
        %1080 = vmatprep.subr.mxu0 0.0
        %1081 = vmatpush1.msra.mxu0 0.0
        %1082 = vmatprep.subr.mxu0 0.0
        %1083 = vmatpush1.msra.mxu0 0.0
        %1084 = vmatprep.subr.mxu0 0.0
        %1085 = vmatpush1.msra.mxu0 0.0
        %1086 = vmatprep.subr.mxu0 0.0
        %1087 = vmatpush1.msra.mxu0 0.0
        %1088 = vmatprep.subr.mxu0 0.0
        %1089 = vmatpush1.msra.mxu0 0.0
        %1090 = vmatprep.subr.mxu0 0.0
        %1091 = vmatpush1.msra.mxu0 0.0
        %1092 = vmatprep.subr.mxu0 0.0
        %1093 = vmatpush1.msra.mxu0 0.0
        %1094 = vmatprep.subr.mxu0 0.0
        %1095 = vmatpush1.msra.mxu0 0.0
        %1096 = vmatprep.subr.mxu0 0.0
        %1097 = vmatpush1.msra.mxu0 0.0
        %1098 = vmatprep.subr.mxu0 0.0
        %1099 = vmatpush1.msra.mxu0 0.0
        %1100 = vmatprep.subr.mxu0 0.0
        %1101 = vmatpush1.msra.mxu0 0.0
        %1102 = vmatprep.subr.mxu0 0.0
        %1103 = vmatpush1.msra.mxu0 0.0
        %1104 = vmatprep.subr.mxu0 0.0
        %1105 = vmatpush1.msra.mxu0 0.0
        %1106 = vmatprep.mubr.f32.mxu0 0.0
        %1107 = vmatmul.mubr.f32.gmra.mrb[0].mxu0 %v1040
        %v1108 = vpop.f32.mrb[0].mxu0
        %v1109 = vadd.f32 0.0, %v1108
        %v1110 = vpop.f32.mrb[0].mxu0
        %v1111 = vadd.f32 0.0, %v1110
        %1112 = vdwg.mxu0
        %v1113 = vadd.f32 %v1022, %v1109
        %v1114 = vadd.f32 %v1023, %v1111
        %s1115 = smul.u32 %s22, 2
        %s1116 = smul.addr %s1115, 8
        %s1117 = scalar_lea.vmem [#allocation2], %s1116
        %1118 = vst [vmem:[%s1117] sm:$0xff] %v1113
        %1119 = vst [vmem:[%s1117 + $0x8] sm:$0xff] %v1114
        %v1120 = vld [vmem:[#allocation3] sm:$0xff]
        %v1121 = vadd.f32 %v1113, %v1114
        %1122 = vadd.xlane.f32.xlu0 %v1121
        %v1123 = vpop.xlane.xlu0 %1122
        %v1124 = vadd.f32 %v1120, %v1123
        %vm1125 = vcmask 7168
        %1126 = vst.msk [vmem:[#allocation3] sm:$0xff] %vm1125, %v1124
        %v1127 = vld [vmem:[#allocation4] sm:$0xff]
        %v1128 = vmul.f32 %v1113, %v1113
        %v1129 = vmul.f32 %v1114, %v1114
        %v1130 = vadd.f32 %v1128, %v1129
        %1131 = vadd.xlane.f32.xlu0 %v1130
        %v1132 = vpop.xlane.xlu0 %1131
        %v1133 = vadd.f32 %v1127, %v1132
        %1134 = vst.msk [vmem:[#allocation4] sm:$0xff] %vm1125, %v1133
      $region48: #{basic_block.1} parent=43 // pred_fallthru
        _
      %p1135 = scmp.eq.s32.totalorder %s21, 1
      // Predicated region
      $region53: #{basic_block.1} parent=43 // pred_check
        %p1136 = pneg %p1135
      $region54: #{basic_block.1} parent=43 // pred_check_branch
        %1138 = sbr.rel (%p1136) target = $region56
      $region55: #{basic_block.1} parent=43 // pred_region
        %p1139 = scmp.eq.s32.totalorder %s22, 0
        // Predicated region
        $region57: #{basic_block.1} parent=55 // pred_check
          %p1140 = pneg %p1139
        $region58: #{basic_block.1} parent=55 // pred_check_branch
          %1142 = sbr.rel (%p1140) target = $region60
        $region59: #{basic_block.1} parent=55 // pred_region
          %1143 = vst [vmem:[#allocation5] sm:$0xff] 0.0
          %1144 = vst [vmem:[#allocation5 + $0x8] sm:$0xff] 0.0
          %vm1145 = vcmask 277504
          %1146 = vst.msk [vmem:[#allocation5 + $0x10] sm:$0xff] %vm1145, 0.0
        $region60: #{basic_block.1} parent=55 // pred_fallthru
          _
        %v1147 = vld [vmem:[#allocation3] sm:$0xff]
        %v1148 = vmul.f32 %v1147, 0.001953125
        %v1149 = vld [vmem:[#allocation4] sm:$0xff]
        %v1150 = vmul.f32 %v1149, 0.001953125
        %v1151 = vmul.f32 %v1148, %v1148
        %v1152 = vsub.f32 %v1150, %v1151
        %v1153 = vmax.f32 %v1152, 0.0
        %v1154 = vld [vmem:[%s3] sm:$0xff]
        %v1155 = vadd.f32 %v1153, 1e-05
        %v1156 = vrsqrt.pop %v1155
        %v1157 = vmul.f32 %v1154, %v1156
        %v1158 = vld [vmem:[%s4] sm:$0xff]
        %v1159 = vmul.f32 %v1148, %v1157
        %v1160 = vsub.f32 %v1158, %v1159
        %s1161 = smul.u32 %s22, 2
        %s1162 = smul.addr %s1161, 8
        %s1163 = scalar_lea.vmem [#allocation2], %s1162
        %v1164 = vld [vmem:[%s1163] sm:$0xff]
        %v1165 = vld [vmem:[%s1163 + $0x8] sm:$0xff]
        %1167 = vset.pattern.permute.xlu0 0
        %1168 = vperm.xlu0 %1167, %v1157
        %v1169 = vpop.permute.xlu0 %1168
        %v1171 = vmul.f32 %v1164, %v1169
        %v1172 = vmul.f32 %v1165, %v1169
        %1174 = vset.pattern.permute.xlu0 0
        %1175 = vperm.xlu0 %1174, %v1160
        %v1176 = vpop.permute.xlu0 %1175
        %v1178 = vadd.f32 %v1171, %v1176
        %v1179 = vadd.f32 %v1172, %v1176
        %v1180 = vmax.f32 %v1178, 0.0
        %v1181 = vmax.f32 %v1179, 0.0
        %1184 = vrot.lane.b32.xlu0 %v1180, 17
        %v1185 = vpop.permute.xlu0 %1184
        %1186 = vrot.lane.b32.xlu0 %v1181, 17
        %v1187 = vpop.permute.xlu0 %1186
        %vm1188 = vcmask 138240
        %v1189 = vsel %vm1188, %v1185, %v1187
        %vm1193 = vcmask 1047688
        %1194 = vst.msk [vmem:[#allocation5] sm:$0xff] %vm1193, %v1185
        %1195 = vst [vmem:[#allocation5 + $0x8] sm:$0xff] %v1189
        %1196 = vst.msk [vmem:[#allocation5 + $0x10] sm:$0xff] %vm1188, %v1187
        %v1197 = vlaneseq
        %v1198 = vand.u32 %v1197, 127
        %v1199 = vadd.s32 %v1198, 128
        %vm1200 = vcmp.lt.s32.totalorder %v1198, 0
        %v1201 = vsub.s32 0, %v1198
        %v1202 = vsel %vm1200, %v1201, %v1198
        %v1203 = vshrl.u32 %v1202, 4
        %v1204 = vand.u32 %v1202, 15
        %v1205 = vsub.s32 0, %v1204
        %v1206 = vsel %vm1200, %v1205, %v1204
        %vm1207 = vcmp.lt.s32.totalorder %v1199, 0
        %v1208 = vsub.s32 0, %v1199
        %v1209 = vsel %vm1207, %v1208, %v1199
        %v1210 = vshrl.u32 %v1209, 4
        %v1211 = vand.u32 %v1209, 15
        %v1212 = vsub.s32 0, %v1211
        %v1213 = vsel %vm1207, %v1212, %v1211
        %vm1214 = vcmp.ne.s32.totalorder %v1206, 0
        %vm1215 = vcmp.ne.s32.totalorder %v1213, 0
        %vm1216 = vcmp.lt.s32.totalorder %v1206, 0
        %vm1217 = vcmp.lt.s32.totalorder %v1213, 0
        %vm1218 = vmand %vm1216, %vm1214
        %vm1219 = vmand %vm1217, %vm1215
        %v1220 = vadd.s32 %v1206, 16
        %v1221 = vadd.s32 %v1213, 16
        %v1222 = vsel %vm1218, %v1220, %v1206
        %v1223 = vsel %vm1219, %v1221, %v1213
        %vm1224 = vcmp.ge.s32.totalorder %v1222, 1
        %vm1225 = vcmp.ge.s32.totalorder %v1223, 1
        %vm1226 = vcmp.le.s32.totalorder %v1222, 14
        %vm1227 = vcmp.le.s32.totalorder %v1223, 14
        %v1228 = vld [vmem:[#allocation5] sm:$0xff]
        %v1229 = vld [vmem:[#allocation5 + $0x8] sm:$0xff]
        %v1230 = vsel %vm1224, %v1228, 0.0
        %v1231 = vsel %vm1225, %v1229, 0.0
        %v1232 = vld [vmem:[%s2] sm:$0xff]
        %v1233 = vld [vmem:[#allocation5 + $0x10] sm:$0xff]
        %s1234 = scalar_lea.vmem %s2, 8
        %v1235 = vld [vmem:[%s1234] sm:$0xff]
        %1239 = vrot.lane.b32.xlu0 %v1228, 127
        %v1240 = vpop.permute.xlu0 %1239
        %1241 = vrot.lane.b32.xlu0 %v1229, 127
        %v1242 = vpop.permute.xlu0 %1241
        %1243 = vrot.lane.b32.xlu0 %v1233, 127
        %v1244 = vpop.permute.xlu0 %1243
        %vm1245 = vcmask 1039360
        %v1246 = vsel %vm1245, %v1240, %v1242
        %v1247 = vsel %vm1245, %v1242, %v1244
        %vm1250 = vcmask 64512
        %v1252 = vsel %vm1250, %v1235, 0
        %1254 = vmatprep.subr.mxu0 %v1247
        %1255 = vmatpush1.msra.mxu0 %v1246
        %1256 = vmatprep.subr.mxu0 0.0
        %1257 = vmatpush1.msra.mxu0 0.0
        %1258 = vmatprep.subr.mxu0 0.0
        %1259 = vmatpush1.msra.mxu0 0.0
        %1260 = vmatprep.subr.mxu0 0.0
        %1261 = vmatpush1.msra.mxu0 0.0
        %1262 = vmatprep.subr.mxu0 0.0
        %1263 = vmatpush1.msra.mxu0 0.0
        %1264 = vmatprep.subr.mxu0 0.0
        %1265 = vmatpush1.msra.mxu0 0.0
        %1266 = vmatprep.subr.mxu0 0.0
        %1267 = vmatpush1.msra.mxu0 0.0
        %1268 = vmatprep.subr.mxu0 0.0
        %1269 = vmatpush1.msra.mxu0 0.0
        %1270 = vmatprep.subr.mxu0 0.0
        %1271 = vmatpush1.msra.mxu0 0.0
        %1272 = vmatprep.subr.mxu0 0.0
        %1273 = vmatpush1.msra.mxu0 0.0
        %1274 = vmatprep.subr.mxu0 0.0
        %1275 = vmatpush1.msra.mxu0 0.0
        %1276 = vmatprep.subr.mxu0 0.0
        %1277 = vmatpush1.msra.mxu0 0.0
        %1278 = vmatprep.subr.mxu0 0.0
        %1279 = vmatpush1.msra.mxu0 0.0
        %1280 = vmatprep.subr.mxu0 0.0
        %1281 = vmatpush1.msra.mxu0 0.0
        %1282 = vmatprep.subr.mxu0 0.0
        %1283 = vmatpush1.msra.mxu0 0.0
        %1284 = vmatprep.subr.mxu0 0.0
        %1285 = vmatpush1.msra.mxu0 0.0
        %1286 = vmatprep.subr.mxu0 0.0
        %1287 = vmatpush1.msra.mxu0 0.0
        %1288 = vmatprep.subr.mxu0 0.0
        %1289 = vmatpush1.msra.mxu0 0.0
        %1290 = vmatprep.subr.mxu0 0.0
        %1291 = vmatpush1.msra.mxu0 0.0
        %1292 = vmatprep.subr.mxu0 0.0
        %1293 = vmatpush1.msra.mxu0 0.0
        %1294 = vmatprep.subr.mxu0 0.0
        %1295 = vmatpush1.msra.mxu0 0.0
        %1296 = vmatprep.subr.mxu0 0.0
        %1297 = vmatpush1.msra.mxu0 0.0
        %1298 = vmatprep.subr.mxu0 0.0
        %1299 = vmatpush1.msra.mxu0 0.0
        %1300 = vmatprep.subr.mxu0 0.0
        %1301 = vmatpush1.msra.mxu0 0.0
        %1302 = vmatprep.subr.mxu0 0.0
        %1303 = vmatpush1.msra.mxu0 0.0
        %1304 = vmatprep.subr.mxu0 0.0
        %1305 = vmatpush1.msra.mxu0 0.0
        %1306 = vmatprep.subr.mxu0 0.0
        %1307 = vmatpush1.msra.mxu0 0.0
        %1308 = vmatprep.subr.mxu0 0.0
        %1309 = vmatpush1.msra.mxu0 0.0
        %1310 = vmatprep.subr.mxu0 0.0
        %1311 = vmatpush1.msra.mxu0 0.0
        %1312 = vmatprep.subr.mxu0 0.0
        %1313 = vmatpush1.msra.mxu0 0.0
        %1314 = vmatprep.subr.mxu0 0.0
        %1315 = vmatpush1.msra.mxu0 0.0
        %1316 = vmatprep.subr.mxu0 0.0
        %1317 = vmatpush1.msra.mxu0 0.0
        %1318 = vmatprep.mubr.f32.mxu0 0.0
        %1319 = vmatmul.mubr.f32.gmra.mrb[0].mxu0 %v1252
        %v1320 = vpop.f32.mrb[0].mxu0
        %v1321 = vadd.f32 0.0, %v1320
        %v1322 = vpop.f32.mrb[0].mxu0
        %v1323 = vadd.f32 0.0, %v1322
        %1324 = vdwg.mxu0
        %v1326 = vsel %vm1250, %v1232, 0
        %1328 = vmatprep.subr.mxu0 %v1231
        %1329 = vmatpush1.msra.mxu0 %v1230
        %1330 = vmatprep.subr.mxu0 0.0
        %1331 = vmatpush1.msra.mxu0 0.0
        %1332 = vmatprep.subr.mxu0 0.0
        %1333 = vmatpush1.msra.mxu0 0.0
        %1334 = vmatprep.subr.mxu0 0.0
        %1335 = vmatpush1.msra.mxu0 0.0
        %1336 = vmatprep.subr.mxu0 0.0
        %1337 = vmatpush1.msra.mxu0 0.0
        %1338 = vmatprep.subr.mxu0 0.0
        %1339 = vmatpush1.msra.mxu0 0.0
        %1340 = vmatprep.subr.mxu0 0.0
        %1341 = vmatpush1.msra.mxu0 0.0
        %1342 = vmatprep.subr.mxu0 0.0
        %1343 = vmatpush1.msra.mxu0 0.0
        %1344 = vmatprep.subr.mxu0 0.0
        %1345 = vmatpush1.msra.mxu0 0.0
        %1346 = vmatprep.subr.mxu0 0.0
        %1347 = vmatpush1.msra.mxu0 0.0
        %1348 = vmatprep.subr.mxu0 0.0
        %1349 = vmatpush1.msra.mxu0 0.0
        %1350 = vmatprep.subr.mxu0 0.0
        %1351 = vmatpush1.msra.mxu0 0.0
        %1352 = vmatprep.subr.mxu0 0.0
        %1353 = vmatpush1.msra.mxu0 0.0
        %1354 = vmatprep.subr.mxu0 0.0
        %1355 = vmatpush1.msra.mxu0 0.0
        %1356 = vmatprep.subr.mxu0 0.0
        %1357 = vmatpush1.msra.mxu0 0.0
        %1358 = vmatprep.subr.mxu0 0.0
        %1359 = vmatpush1.msra.mxu0 0.0
        %1360 = vmatprep.subr.mxu0 0.0
        %1361 = vmatpush1.msra.mxu0 0.0
        %1362 = vmatprep.subr.mxu0 0.0
        %1363 = vmatpush1.msra.mxu0 0.0
        %1364 = vmatprep.subr.mxu0 0.0
        %1365 = vmatpush1.msra.mxu0 0.0
        %1366 = vmatprep.subr.mxu0 0.0
        %1367 = vmatpush1.msra.mxu0 0.0
        %1368 = vmatprep.subr.mxu0 0.0
        %1369 = vmatpush1.msra.mxu0 0.0
        %1370 = vmatprep.subr.mxu0 0.0
        %1371 = vmatpush1.msra.mxu0 0.0
        %1372 = vmatprep.subr.mxu0 0.0
        %1373 = vmatpush1.msra.mxu0 0.0
        %1374 = vmatprep.subr.mxu0 0.0
        %1375 = vmatpush1.msra.mxu0 0.0
        %1376 = vmatprep.subr.mxu0 0.0
        %1377 = vmatpush1.msra.mxu0 0.0
        %1378 = vmatprep.subr.mxu0 0.0
        %1379 = vmatpush1.msra.mxu0 0.0
        %1380 = vmatprep.subr.mxu0 0.0
        %1381 = vmatpush1.msra.mxu0 0.0
        %1382 = vmatprep.subr.mxu0 0.0
        %1383 = vmatpush1.msra.mxu0 0.0
        %1384 = vmatprep.subr.mxu0 0.0
        %1385 = vmatpush1.msra.mxu0 0.0
        %1386 = vmatprep.subr.mxu0 0.0
        %1387 = vmatpush1.msra.mxu0 0.0
        %1388 = vmatprep.subr.mxu0 0.0
        %1389 = vmatpush1.msra.mxu0 0.0
        %1390 = vmatprep.subr.mxu0 0.0
        %1391 = vmatpush1.msra.mxu0 0.0
        %1392 = vmatprep.mubr.f32.mxu0 0.0
        %1393 = vmatmul.mubr.f32.gmra.mrb[0].mxu0 %v1326
        %v1394 = vpop.f32.mrb[0].mxu0
        %v1395 = vadd.f32 %v1321, %v1394
        %v1396 = vpop.f32.mrb[0].mxu0
        %v1397 = vadd.f32 %v1323, %v1396
        %1398 = vdwg.mxu0
        %1399 = vrot.lane.b32.xlu0 %v1228, 126
        %v1400 = vpop.permute.xlu0 %1399
        %1401 = vrot.lane.b32.xlu0 %v1229, 126
        %v1402 = vpop.permute.xlu0 %1401
        %1403 = vrot.lane.b32.xlu0 %v1233, 126
        %v1404 = vpop.permute.xlu0 %1403
        %vm1405 = vcmask 1031168
        %v1406 = vsel %vm1405, %v1400, %v1402
        %v1407 = vsel %vm1405, %v1402, %v1404
        %v1410 = vsel %vm1226, %v1406, 0.0
        %v1411 = vsel %vm1227, %v1407, 0.0
        %s1412 = scalar_lea.vmem %s2, 16
        %v1413 = vld [vmem:[%s1412] sm:$0xff]
        %v1415 = vsel %vm1250, %v1413, 0
        %1417 = vmatprep.subr.mxu0 %v1411
        %1418 = vmatpush1.msra.mxu0 %v1410
        %1419 = vmatprep.subr.mxu0 0.0
        %1420 = vmatpush1.msra.mxu0 0.0
        %1421 = vmatprep.subr.mxu0 0.0
        %1422 = vmatpush1.msra.mxu0 0.0
        %1423 = vmatprep.subr.mxu0 0.0
        %1424 = vmatpush1.msra.mxu0 0.0
        %1425 = vmatprep.subr.mxu0 0.0
        %1426 = vmatpush1.msra.mxu0 0.0
        %1427 = vmatprep.subr.mxu0 0.0
        %1428 = vmatpush1.msra.mxu0 0.0
        %1429 = vmatprep.subr.mxu0 0.0
        %1430 = vmatpush1.msra.mxu0 0.0
        %1431 = vmatprep.subr.mxu0 0.0
        %1432 = vmatpush1.msra.mxu0 0.0
        %1433 = vmatprep.subr.mxu0 0.0
        %1434 = vmatpush1.msra.mxu0 0.0
        %1435 = vmatprep.subr.mxu0 0.0
        %1436 = vmatpush1.msra.mxu0 0.0
        %1437 = vmatprep.subr.mxu0 0.0
        %1438 = vmatpush1.msra.mxu0 0.0
        %1439 = vmatprep.subr.mxu0 0.0
        %1440 = vmatpush1.msra.mxu0 0.0
        %1441 = vmatprep.subr.mxu0 0.0
        %1442 = vmatpush1.msra.mxu0 0.0
        %1443 = vmatprep.subr.mxu0 0.0
        %1444 = vmatpush1.msra.mxu0 0.0
        %1445 = vmatprep.subr.mxu0 0.0
        %1446 = vmatpush1.msra.mxu0 0.0
        %1447 = vmatprep.subr.mxu0 0.0
        %1448 = vmatpush1.msra.mxu0 0.0
        %1449 = vmatprep.subr.mxu0 0.0
        %1450 = vmatpush1.msra.mxu0 0.0
        %1451 = vmatprep.subr.mxu0 0.0
        %1452 = vmatpush1.msra.mxu0 0.0
        %1453 = vmatprep.subr.mxu0 0.0
        %1454 = vmatpush1.msra.mxu0 0.0
        %1455 = vmatprep.subr.mxu0 0.0
        %1456 = vmatpush1.msra.mxu0 0.0
        %1457 = vmatprep.subr.mxu0 0.0
        %1458 = vmatpush1.msra.mxu0 0.0
        %1459 = vmatprep.subr.mxu0 0.0
        %1460 = vmatpush1.msra.mxu0 0.0
        %1461 = vmatprep.subr.mxu0 0.0
        %1462 = vmatpush1.msra.mxu0 0.0
        %1463 = vmatprep.subr.mxu0 0.0
        %1464 = vmatpush1.msra.mxu0 0.0
        %1465 = vmatprep.subr.mxu0 0.0
        %1466 = vmatpush1.msra.mxu0 0.0
        %1467 = vmatprep.subr.mxu0 0.0
        %1468 = vmatpush1.msra.mxu0 0.0
        %1469 = vmatprep.subr.mxu0 0.0
        %1470 = vmatpush1.msra.mxu0 0.0
        %1471 = vmatprep.subr.mxu0 0.0
        %1472 = vmatpush1.msra.mxu0 0.0
        %1473 = vmatprep.subr.mxu0 0.0
        %1474 = vmatpush1.msra.mxu0 0.0
        %1475 = vmatprep.subr.mxu0 0.0
        %1476 = vmatpush1.msra.mxu0 0.0
        %1477 = vmatprep.subr.mxu0 0.0
        %1478 = vmatpush1.msra.mxu0 0.0
        %1479 = vmatprep.subr.mxu0 0.0
        %1480 = vmatpush1.msra.mxu0 0.0
        %1481 = vmatprep.mubr.f32.mxu0 0.0
        %1482 = vmatmul.mubr.f32.gmra.mrb[0].mxu0 %v1415
        %v1483 = vpop.f32.mrb[0].mxu0
        %v1484 = vadd.f32 0.0, %v1483
        %v1485 = vpop.f32.mrb[0].mxu0
        %v1486 = vadd.f32 0.0, %v1485
        %1487 = vdwg.mxu0
        %v1488 = vadd.f32 %v1395, %v1484
        %v1489 = vadd.f32 %v1397, %v1486
        %1490 = vrot.lane.b32.xlu0 %v1228, 112
        %v1491 = vpop.permute.xlu0 %1490
        %1492 = vrot.lane.b32.xlu0 %v1229, 112
        %v1493 = vpop.permute.xlu0 %1492
        %1494 = vrot.lane.b32.xlu0 %v1233, 112
        %v1495 = vpop.permute.xlu0 %1494
        %vm1496 = vcmask 916480
        %v1497 = vsel %vm1496, %v1491, %v1493
        %v1498 = vsel %vm1496, %v1493, %v1495
        %v1501 = vsel %vm1224, %v1497, 0.0
        %v1502 = vsel %vm1225, %v1498, 0.0
        %s1503 = scalar_lea.vmem %s2, 24
        %v1504 = vld [vmem:[%s1503] sm:$0xff]
        %v1506 = vsel %vm1250, %v1504, 0
        %1508 = vmatprep.subr.mxu0 %v1502
        %1509 = vmatpush1.msra.mxu0 %v1501
        %1510 = vmatprep.subr.mxu0 0.0
        %1511 = vmatpush1.msra.mxu0 0.0
        %1512 = vmatprep.subr.mxu0 0.0
        %1513 = vmatpush1.msra.mxu0 0.0
        %1514 = vmatprep.subr.mxu0 0.0
        %1515 = vmatpush1.msra.mxu0 0.0
        %1516 = vmatprep.subr.mxu0 0.0
        %1517 = vmatpush1.msra.mxu0 0.0
        %1518 = vmatprep.subr.mxu0 0.0
        %1519 = vmatpush1.msra.mxu0 0.0
        %1520 = vmatprep.subr.mxu0 0.0
        %1521 = vmatpush1.msra.mxu0 0.0
        %1522 = vmatprep.subr.mxu0 0.0
        %1523 = vmatpush1.msra.mxu0 0.0
        %1524 = vmatprep.subr.mxu0 0.0
        %1525 = vmatpush1.msra.mxu0 0.0
        %1526 = vmatprep.subr.mxu0 0.0
        %1527 = vmatpush1.msra.mxu0 0.0
        %1528 = vmatprep.subr.mxu0 0.0
        %1529 = vmatpush1.msra.mxu0 0.0
        %1530 = vmatprep.subr.mxu0 0.0
        %1531 = vmatpush1.msra.mxu0 0.0
        %1532 = vmatprep.subr.mxu0 0.0
        %1533 = vmatpush1.msra.mxu0 0.0
        %1534 = vmatprep.subr.mxu0 0.0
        %1535 = vmatpush1.msra.mxu0 0.0
        %1536 = vmatprep.subr.mxu0 0.0
        %1537 = vmatpush1.msra.mxu0 0.0
        %1538 = vmatprep.subr.mxu0 0.0
        %1539 = vmatpush1.msra.mxu0 0.0
        %1540 = vmatprep.subr.mxu0 0.0
        %1541 = vmatpush1.msra.mxu0 0.0
        %1542 = vmatprep.subr.mxu0 0.0
        %1543 = vmatpush1.msra.mxu0 0.0
        %1544 = vmatprep.subr.mxu0 0.0
        %1545 = vmatpush1.msra.mxu0 0.0
        %1546 = vmatprep.subr.mxu0 0.0
        %1547 = vmatpush1.msra.mxu0 0.0
        %1548 = vmatprep.subr.mxu0 0.0
        %1549 = vmatpush1.msra.mxu0 0.0
        %1550 = vmatprep.subr.mxu0 0.0
        %1551 = vmatpush1.msra.mxu0 0.0
        %1552 = vmatprep.subr.mxu0 0.0
        %1553 = vmatpush1.msra.mxu0 0.0
        %1554 = vmatprep.subr.mxu0 0.0
        %1555 = vmatpush1.msra.mxu0 0.0
        %1556 = vmatprep.subr.mxu0 0.0
        %1557 = vmatpush1.msra.mxu0 0.0
        %1558 = vmatprep.subr.mxu0 0.0
        %1559 = vmatpush1.msra.mxu0 0.0
        %1560 = vmatprep.subr.mxu0 0.0
        %1561 = vmatpush1.msra.mxu0 0.0
        %1562 = vmatprep.subr.mxu0 0.0
        %1563 = vmatpush1.msra.mxu0 0.0
        %1564 = vmatprep.subr.mxu0 0.0
        %1565 = vmatpush1.msra.mxu0 0.0
        %1566 = vmatprep.subr.mxu0 0.0
        %1567 = vmatpush1.msra.mxu0 0.0
        %1568 = vmatprep.subr.mxu0 0.0
        %1569 = vmatpush1.msra.mxu0 0.0
        %1570 = vmatprep.subr.mxu0 0.0
        %1571 = vmatpush1.msra.mxu0 0.0
        %1572 = vmatprep.mubr.f32.mxu0 0.0
        %1573 = vmatmul.mubr.f32.gmra.mrb[0].mxu0 %v1506
        %v1574 = vpop.f32.mrb[0].mxu0
        %v1575 = vadd.f32 0.0, %v1574
        %v1576 = vpop.f32.mrb[0].mxu0
        %v1577 = vadd.f32 0.0, %v1576
        %1578 = vdwg.mxu0
        %v1579 = vadd.f32 %v1488, %v1575
        %v1580 = vadd.f32 %v1489, %v1577
        %s1581 = scalar_lea.vmem %s2, 32
        %v1582 = vld [vmem:[%s1581] sm:$0xff]
        %1583 = vrot.lane.b32.xlu0 %v1228, 111
        %v1584 = vpop.permute.xlu0 %1583
        %1585 = vrot.lane.b32.xlu0 %v1229, 111
        %v1586 = vpop.permute.xlu0 %1585
        %1587 = vrot.lane.b32.xlu0 %v1233, 111
        %v1588 = vpop.permute.xlu0 %1587
        %vm1589 = vcmask 908288
        %v1590 = vsel %vm1589, %v1584, %v1586
        %v1591 = vsel %vm1589, %v1586, %v1588
        %v1595 = vsel %vm1250, %v1582, 0
        %1597 = vmatprep.subr.mxu0 %v1591
        %1598 = vmatpush1.msra.mxu0 %v1590
        %1599 = vmatprep.subr.mxu0 0.0
        %1600 = vmatpush1.msra.mxu0 0.0
        %1601 = vmatprep.subr.mxu0 0.0
        %1602 = vmatpush1.msra.mxu0 0.0
        %1603 = vmatprep.subr.mxu0 0.0
        %1604 = vmatpush1.msra.mxu0 0.0
        %1605 = vmatprep.subr.mxu0 0.0
        %1606 = vmatpush1.msra.mxu0 0.0
        %1607 = vmatprep.subr.mxu0 0.0
        %1608 = vmatpush1.msra.mxu0 0.0
        %1609 = vmatprep.subr.mxu0 0.0
        %1610 = vmatpush1.msra.mxu0 0.0
        %1611 = vmatprep.subr.mxu0 0.0
        %1612 = vmatpush1.msra.mxu0 0.0
        %1613 = vmatprep.subr.mxu0 0.0
        %1614 = vmatpush1.msra.mxu0 0.0
        %1615 = vmatprep.subr.mxu0 0.0
        %1616 = vmatpush1.msra.mxu0 0.0
        %1617 = vmatprep.subr.mxu0 0.0
        %1618 = vmatpush1.msra.mxu0 0.0
        %1619 = vmatprep.subr.mxu0 0.0
        %1620 = vmatpush1.msra.mxu0 0.0
        %1621 = vmatprep.subr.mxu0 0.0
        %1622 = vmatpush1.msra.mxu0 0.0
        %1623 = vmatprep.subr.mxu0 0.0
        %1624 = vmatpush1.msra.mxu0 0.0
        %1625 = vmatprep.subr.mxu0 0.0
        %1626 = vmatpush1.msra.mxu0 0.0
        %1627 = vmatprep.subr.mxu0 0.0
        %1628 = vmatpush1.msra.mxu0 0.0
        %1629 = vmatprep.subr.mxu0 0.0
        %1630 = vmatpush1.msra.mxu0 0.0
        %1631 = vmatprep.subr.mxu0 0.0
        %1632 = vmatpush1.msra.mxu0 0.0
        %1633 = vmatprep.subr.mxu0 0.0
        %1634 = vmatpush1.msra.mxu0 0.0
        %1635 = vmatprep.subr.mxu0 0.0
        %1636 = vmatpush1.msra.mxu0 0.0
        %1637 = vmatprep.subr.mxu0 0.0
        %1638 = vmatpush1.msra.mxu0 0.0
        %1639 = vmatprep.subr.mxu0 0.0
        %1640 = vmatpush1.msra.mxu0 0.0
        %1641 = vmatprep.subr.mxu0 0.0
        %1642 = vmatpush1.msra.mxu0 0.0
        %1643 = vmatprep.subr.mxu0 0.0
        %1644 = vmatpush1.msra.mxu0 0.0
        %1645 = vmatprep.subr.mxu0 0.0
        %1646 = vmatpush1.msra.mxu0 0.0
        %1647 = vmatprep.subr.mxu0 0.0
        %1648 = vmatpush1.msra.mxu0 0.0
        %1649 = vmatprep.subr.mxu0 0.0
        %1650 = vmatpush1.msra.mxu0 0.0
        %1651 = vmatprep.subr.mxu0 0.0
        %1652 = vmatpush1.msra.mxu0 0.0
        %1653 = vmatprep.subr.mxu0 0.0
        %1654 = vmatpush1.msra.mxu0 0.0
        %1655 = vmatprep.subr.mxu0 0.0
        %1656 = vmatpush1.msra.mxu0 0.0
        %1657 = vmatprep.subr.mxu0 0.0
        %1658 = vmatpush1.msra.mxu0 0.0
        %1659 = vmatprep.subr.mxu0 0.0
        %1660 = vmatpush1.msra.mxu0 0.0
        %1661 = vmatprep.mubr.f32.mxu0 0.0
        %1662 = vmatmul.mubr.f32.gmra.mrb[0].mxu0 %v1595
        %v1663 = vpop.f32.mrb[0].mxu0
        %v1664 = vadd.f32 0.0, %v1663
        %v1665 = vpop.f32.mrb[0].mxu0
        %v1666 = vadd.f32 0.0, %v1665
        %1667 = vdwg.mxu0
        %v1668 = vadd.f32 %v1579, %v1664
        %v1669 = vadd.f32 %v1580, %v1666
        %1670 = vrot.lane.b32.xlu0 %v1228, 110
        %v1671 = vpop.permute.xlu0 %1670
        %1672 = vrot.lane.b32.xlu0 %v1229, 110
        %v1673 = vpop.permute.xlu0 %1672
        %1674 = vrot.lane.b32.xlu0 %v1233, 110
        %v1675 = vpop.permute.xlu0 %1674
        %vm1676 = vcmask 900096
        %v1677 = vsel %vm1676, %v1671, %v1673
        %v1678 = vsel %vm1676, %v1673, %v1675
        %v1681 = vsel %vm1226, %v1677, 0.0
        %v1682 = vsel %vm1227, %v1678, 0.0
        %s1683 = scalar_lea.vmem %s2, 40
        %v1684 = vld [vmem:[%s1683] sm:$0xff]
        %v1686 = vsel %vm1250, %v1684, 0
        %1688 = vmatprep.subr.mxu0 %v1682
        %1689 = vmatpush1.msra.mxu0 %v1681
        %1690 = vmatprep.subr.mxu0 0.0
        %1691 = vmatpush1.msra.mxu0 0.0
        %1692 = vmatprep.subr.mxu0 0.0
        %1693 = vmatpush1.msra.mxu0 0.0
        %1694 = vmatprep.subr.mxu0 0.0
        %1695 = vmatpush1.msra.mxu0 0.0
        %1696 = vmatprep.subr.mxu0 0.0
        %1697 = vmatpush1.msra.mxu0 0.0
        %1698 = vmatprep.subr.mxu0 0.0
        %1699 = vmatpush1.msra.mxu0 0.0
        %1700 = vmatprep.subr.mxu0 0.0
        %1701 = vmatpush1.msra.mxu0 0.0
        %1702 = vmatprep.subr.mxu0 0.0
        %1703 = vmatpush1.msra.mxu0 0.0
        %1704 = vmatprep.subr.mxu0 0.0
        %1705 = vmatpush1.msra.mxu0 0.0
        %1706 = vmatprep.subr.mxu0 0.0
        %1707 = vmatpush1.msra.mxu0 0.0
        %1708 = vmatprep.subr.mxu0 0.0
        %1709 = vmatpush1.msra.mxu0 0.0
        %1710 = vmatprep.subr.mxu0 0.0
        %1711 = vmatpush1.msra.mxu0 0.0
        %1712 = vmatprep.subr.mxu0 0.0
        %1713 = vmatpush1.msra.mxu0 0.0
        %1714 = vmatprep.subr.mxu0 0.0
        %1715 = vmatpush1.msra.mxu0 0.0
        %1716 = vmatprep.subr.mxu0 0.0
        %1717 = vmatpush1.msra.mxu0 0.0
        %1718 = vmatprep.subr.mxu0 0.0
        %1719 = vmatpush1.msra.mxu0 0.0
        %1720 = vmatprep.subr.mxu0 0.0
        %1721 = vmatpush1.msra.mxu0 0.0
        %1722 = vmatprep.subr.mxu0 0.0
        %1723 = vmatpush1.msra.mxu0 0.0
        %1724 = vmatprep.subr.mxu0 0.0
        %1725 = vmatpush1.msra.mxu0 0.0
        %1726 = vmatprep.subr.mxu0 0.0
        %1727 = vmatpush1.msra.mxu0 0.0
        %1728 = vmatprep.subr.mxu0 0.0
        %1729 = vmatpush1.msra.mxu0 0.0
        %1730 = vmatprep.subr.mxu0 0.0
        %1731 = vmatpush1.msra.mxu0 0.0
        %1732 = vmatprep.subr.mxu0 0.0
        %1733 = vmatpush1.msra.mxu0 0.0
        %1734 = vmatprep.subr.mxu0 0.0
        %1735 = vmatpush1.msra.mxu0 0.0
        %1736 = vmatprep.subr.mxu0 0.0
        %1737 = vmatpush1.msra.mxu0 0.0
        %1738 = vmatprep.subr.mxu0 0.0
        %1739 = vmatpush1.msra.mxu0 0.0
        %1740 = vmatprep.subr.mxu0 0.0
        %1741 = vmatpush1.msra.mxu0 0.0
        %1742 = vmatprep.subr.mxu0 0.0
        %1743 = vmatpush1.msra.mxu0 0.0
        %1744 = vmatprep.subr.mxu0 0.0
        %1745 = vmatpush1.msra.mxu0 0.0
        %1746 = vmatprep.subr.mxu0 0.0
        %1747 = vmatpush1.msra.mxu0 0.0
        %1748 = vmatprep.subr.mxu0 0.0
        %1749 = vmatpush1.msra.mxu0 0.0
        %1750 = vmatprep.subr.mxu0 0.0
        %1751 = vmatpush1.msra.mxu0 0.0
        %1752 = vmatprep.mubr.f32.mxu0 0.0
        %1753 = vmatmul.mubr.f32.gmra.mrb[0].mxu0 %v1686
        %v1754 = vpop.f32.mrb[0].mxu0
        %v1755 = vadd.f32 0.0, %v1754
        %v1756 = vpop.f32.mrb[0].mxu0
        %v1757 = vadd.f32 0.0, %v1756
        %1758 = vdwg.mxu0
        %v1759 = vadd.f32 %v1668, %v1755
        %v1760 = vadd.f32 %v1669, %v1757
        %1761 = vrot.lane.b32.xlu0 %v1228, 96
        %v1762 = vpop.permute.xlu0 %1761
        %1763 = vrot.lane.b32.xlu0 %v1229, 96
        %v1764 = vpop.permute.xlu0 %1763
        %1765 = vrot.lane.b32.xlu0 %v1233, 96
        %v1766 = vpop.permute.xlu0 %1765
        %vm1767 = vcmask 785408
        %v1768 = vsel %vm1767, %v1762, %v1764
        %v1769 = vsel %vm1767, %v1764, %v1766
        %v1772 = vsel %vm1224, %v1768, 0.0
        %v1773 = vsel %vm1225, %v1769, 0.0
        %s1774 = scalar_lea.vmem %s2, 48
        %v1775 = vld [vmem:[%s1774] sm:$0xff]
        %v1777 = vsel %vm1250, %v1775, 0
        %1779 = vmatprep.subr.mxu0 %v1773
        %1780 = vmatpush1.msra.mxu0 %v1772
        %1781 = vmatprep.subr.mxu0 0.0
        %1782 = vmatpush1.msra.mxu0 0.0
        %1783 = vmatprep.subr.mxu0 0.0
        %1784 = vmatpush1.msra.mxu0 0.0
        %1785 = vmatprep.subr.mxu0 0.0
        %1786 = vmatpush1.msra.mxu0 0.0
        %1787 = vmatprep.subr.mxu0 0.0
        %1788 = vmatpush1.msra.mxu0 0.0
        %1789 = vmatprep.subr.mxu0 0.0
        %1790 = vmatpush1.msra.mxu0 0.0
        %1791 = vmatprep.subr.mxu0 0.0
        %1792 = vmatpush1.msra.mxu0 0.0
        %1793 = vmatprep.subr.mxu0 0.0
        %1794 = vmatpush1.msra.mxu0 0.0
        %1795 = vmatprep.subr.mxu0 0.0
        %1796 = vmatpush1.msra.mxu0 0.0
        %1797 = vmatprep.subr.mxu0 0.0
        %1798 = vmatpush1.msra.mxu0 0.0
        %1799 = vmatprep.subr.mxu0 0.0
        %1800 = vmatpush1.msra.mxu0 0.0
        %1801 = vmatprep.subr.mxu0 0.0
        %1802 = vmatpush1.msra.mxu0 0.0
        %1803 = vmatprep.subr.mxu0 0.0
        %1804 = vmatpush1.msra.mxu0 0.0
        %1805 = vmatprep.subr.mxu0 0.0
        %1806 = vmatpush1.msra.mxu0 0.0
        %1807 = vmatprep.subr.mxu0 0.0
        %1808 = vmatpush1.msra.mxu0 0.0
        %1809 = vmatprep.subr.mxu0 0.0
        %1810 = vmatpush1.msra.mxu0 0.0
        %1811 = vmatprep.subr.mxu0 0.0
        %1812 = vmatpush1.msra.mxu0 0.0
        %1813 = vmatprep.subr.mxu0 0.0
        %1814 = vmatpush1.msra.mxu0 0.0
        %1815 = vmatprep.subr.mxu0 0.0
        %1816 = vmatpush1.msra.mxu0 0.0
        %1817 = vmatprep.subr.mxu0 0.0
        %1818 = vmatpush1.msra.mxu0 0.0
        %1819 = vmatprep.subr.mxu0 0.0
        %1820 = vmatpush1.msra.mxu0 0.0
        %1821 = vmatprep.subr.mxu0 0.0
        %1822 = vmatpush1.msra.mxu0 0.0
        %1823 = vmatprep.subr.mxu0 0.0
        %1824 = vmatpush1.msra.mxu0 0.0
        %1825 = vmatprep.subr.mxu0 0.0
        %1826 = vmatpush1.msra.mxu0 0.0
        %1827 = vmatprep.subr.mxu0 0.0
        %1828 = vmatpush1.msra.mxu0 0.0
        %1829 = vmatprep.subr.mxu0 0.0
        %1830 = vmatpush1.msra.mxu0 0.0
        %1831 = vmatprep.subr.mxu0 0.0
        %1832 = vmatpush1.msra.mxu0 0.0
        %1833 = vmatprep.subr.mxu0 0.0
        %1834 = vmatpush1.msra.mxu0 0.0
        %1835 = vmatprep.subr.mxu0 0.0
        %1836 = vmatpush1.msra.mxu0 0.0
        %1837 = vmatprep.subr.mxu0 0.0
        %1838 = vmatpush1.msra.mxu0 0.0
        %1839 = vmatprep.subr.mxu0 0.0
        %1840 = vmatpush1.msra.mxu0 0.0
        %1841 = vmatprep.subr.mxu0 0.0
        %1842 = vmatpush1.msra.mxu0 0.0
        %1843 = vmatprep.mubr.f32.mxu0 0.0
        %1844 = vmatmul.mubr.f32.gmra.mrb[0].mxu0 %v1777
        %v1845 = vpop.f32.mrb[0].mxu0
        %v1846 = vadd.f32 0.0, %v1845
        %v1847 = vpop.f32.mrb[0].mxu0
        %v1848 = vadd.f32 0.0, %v1847
        %1849 = vdwg.mxu0
        %v1850 = vadd.f32 %v1759, %v1846
        %v1851 = vadd.f32 %v1760, %v1848
        %s1852 = scalar_lea.vmem %s2, 56
        %v1853 = vld [vmem:[%s1852] sm:$0xff]
        %1854 = vrot.lane.b32.xlu0 %v1228, 95
        %v1855 = vpop.permute.xlu0 %1854
        %1856 = vrot.lane.b32.xlu0 %v1229, 95
        %v1857 = vpop.permute.xlu0 %1856
        %1858 = vrot.lane.b32.xlu0 %v1233, 95
        %v1859 = vpop.permute.xlu0 %1858
        %vm1860 = vcmask 777216
        %v1861 = vsel %vm1860, %v1855, %v1857
        %v1862 = vsel %vm1860, %v1857, %v1859
        %v1866 = vsel %vm1250, %v1853, 0
        %1868 = vmatprep.subr.mxu0 %v1862
        %1869 = vmatpush1.msra.mxu0 %v1861
        %1870 = vmatprep.subr.mxu0 0.0
        %1871 = vmatpush1.msra.mxu0 0.0
        %1872 = vmatprep.subr.mxu0 0.0
        %1873 = vmatpush1.msra.mxu0 0.0
        %1874 = vmatprep.subr.mxu0 0.0
        %1875 = vmatpush1.msra.mxu0 0.0
        %1876 = vmatprep.subr.mxu0 0.0
        %1877 = vmatpush1.msra.mxu0 0.0
        %1878 = vmatprep.subr.mxu0 0.0
        %1879 = vmatpush1.msra.mxu0 0.0
        %1880 = vmatprep.subr.mxu0 0.0
        %1881 = vmatpush1.msra.mxu0 0.0
        %1882 = vmatprep.subr.mxu0 0.0
        %1883 = vmatpush1.msra.mxu0 0.0
        %1884 = vmatprep.subr.mxu0 0.0
        %1885 = vmatpush1.msra.mxu0 0.0
        %1886 = vmatprep.subr.mxu0 0.0
        %1887 = vmatpush1.msra.mxu0 0.0
        %1888 = vmatprep.subr.mxu0 0.0
        %1889 = vmatpush1.msra.mxu0 0.0
        %1890 = vmatprep.subr.mxu0 0.0
        %1891 = vmatpush1.msra.mxu0 0.0
        %1892 = vmatprep.subr.mxu0 0.0
        %1893 = vmatpush1.msra.mxu0 0.0
        %1894 = vmatprep.subr.mxu0 0.0
        %1895 = vmatpush1.msra.mxu0 0.0
        %1896 = vmatprep.subr.mxu0 0.0
        %1897 = vmatpush1.msra.mxu0 0.0
        %1898 = vmatprep.subr.mxu0 0.0
        %1899 = vmatpush1.msra.mxu0 0.0
        %1900 = vmatprep.subr.mxu0 0.0
        %1901 = vmatpush1.msra.mxu0 0.0
        %1902 = vmatprep.subr.mxu0 0.0
        %1903 = vmatpush1.msra.mxu0 0.0
        %1904 = vmatprep.subr.mxu0 0.0
        %1905 = vmatpush1.msra.mxu0 0.0
        %1906 = vmatprep.subr.mxu0 0.0
        %1907 = vmatpush1.msra.mxu0 0.0
        %1908 = vmatprep.subr.mxu0 0.0
        %1909 = vmatpush1.msra.mxu0 0.0
        %1910 = vmatprep.subr.mxu0 0.0
        %1911 = vmatpush1.msra.mxu0 0.0
        %1912 = vmatprep.subr.mxu0 0.0
        %1913 = vmatpush1.msra.mxu0 0.0
        %1914 = vmatprep.subr.mxu0 0.0
        %1915 = vmatpush1.msra.mxu0 0.0
        %1916 = vmatprep.subr.mxu0 0.0
        %1917 = vmatpush1.msra.mxu0 0.0
        %1918 = vmatprep.subr.mxu0 0.0
        %1919 = vmatpush1.msra.mxu0 0.0
        %1920 = vmatprep.subr.mxu0 0.0
        %1921 = vmatpush1.msra.mxu0 0.0
        %1922 = vmatprep.subr.mxu0 0.0
        %1923 = vmatpush1.msra.mxu0 0.0
        %1924 = vmatprep.subr.mxu0 0.0
        %1925 = vmatpush1.msra.mxu0 0.0
        %1926 = vmatprep.subr.mxu0 0.0
        %1927 = vmatpush1.msra.mxu0 0.0
        %1928 = vmatprep.subr.mxu0 0.0
        %1929 = vmatpush1.msra.mxu0 0.0
        %1930 = vmatprep.subr.mxu0 0.0
        %1931 = vmatpush1.msra.mxu0 0.0
        %1932 = vmatprep.mubr.f32.mxu0 0.0
        %1933 = vmatmul.mubr.f32.gmra.mrb[0].mxu0 %v1866
        %v1934 = vpop.f32.mrb[0].mxu0
        %v1935 = vadd.f32 0.0, %v1934
        %v1936 = vpop.f32.mrb[0].mxu0
        %v1937 = vadd.f32 0.0, %v1936
        %1938 = vdwg.mxu0
        %v1939 = vadd.f32 %v1850, %v1935
        %v1940 = vadd.f32 %v1851, %v1937
        %1941 = vrot.lane.b32.xlu0 %v1228, 94
        %v1942 = vpop.permute.xlu0 %1941
        %1943 = vrot.lane.b32.xlu0 %v1229, 94
        %v1944 = vpop.permute.xlu0 %1943
        %1945 = vrot.lane.b32.xlu0 %v1233, 94
        %v1946 = vpop.permute.xlu0 %1945
        %vm1947 = vcmask 769024
        %v1948 = vsel %vm1947, %v1942, %v1944
        %v1949 = vsel %vm1947, %v1944, %v1946
        %v1952 = vsel %vm1226, %v1948, 0.0
        %v1953 = vsel %vm1227, %v1949, 0.0
        %s1954 = scalar_lea.vmem %s2, 64
        %v1955 = vld [vmem:[%s1954] sm:$0xff]
        %v1957 = vsel %vm1250, %v1955, 0
        %1959 = vmatprep.subr.mxu0 %v1953
        %1960 = vmatpush1.msra.mxu0 %v1952
        %1961 = vmatprep.subr.mxu0 0.0
        %1962 = vmatpush1.msra.mxu0 0.0
        %1963 = vmatprep.subr.mxu0 0.0
        %1964 = vmatpush1.msra.mxu0 0.0
        %1965 = vmatprep.subr.mxu0 0.0
        %1966 = vmatpush1.msra.mxu0 0.0
        %1967 = vmatprep.subr.mxu0 0.0
        %1968 = vmatpush1.msra.mxu0 0.0
        %1969 = vmatprep.subr.mxu0 0.0
        %1970 = vmatpush1.msra.mxu0 0.0
        %1971 = vmatprep.subr.mxu0 0.0
        %1972 = vmatpush1.msra.mxu0 0.0
        %1973 = vmatprep.subr.mxu0 0.0
        %1974 = vmatpush1.msra.mxu0 0.0
        %1975 = vmatprep.subr.mxu0 0.0
        %1976 = vmatpush1.msra.mxu0 0.0
        %1977 = vmatprep.subr.mxu0 0.0
        %1978 = vmatpush1.msra.mxu0 0.0
        %1979 = vmatprep.subr.mxu0 0.0
        %1980 = vmatpush1.msra.mxu0 0.0
        %1981 = vmatprep.subr.mxu0 0.0
        %1982 = vmatpush1.msra.mxu0 0.0
        %1983 = vmatprep.subr.mxu0 0.0
        %1984 = vmatpush1.msra.mxu0 0.0
        %1985 = vmatprep.subr.mxu0 0.0
        %1986 = vmatpush1.msra.mxu0 0.0
        %1987 = vmatprep.subr.mxu0 0.0
        %1988 = vmatpush1.msra.mxu0 0.0
        %1989 = vmatprep.subr.mxu0 0.0
        %1990 = vmatpush1.msra.mxu0 0.0
        %1991 = vmatprep.subr.mxu0 0.0
        %1992 = vmatpush1.msra.mxu0 0.0
        %1993 = vmatprep.subr.mxu0 0.0
        %1994 = vmatpush1.msra.mxu0 0.0
        %1995 = vmatprep.subr.mxu0 0.0
        %1996 = vmatpush1.msra.mxu0 0.0
        %1997 = vmatprep.subr.mxu0 0.0
        %1998 = vmatpush1.msra.mxu0 0.0
        %1999 = vmatprep.subr.mxu0 0.0
        %2000 = vmatpush1.msra.mxu0 0.0
        %2001 = vmatprep.subr.mxu0 0.0
        %2002 = vmatpush1.msra.mxu0 0.0
        %2003 = vmatprep.subr.mxu0 0.0
        %2004 = vmatpush1.msra.mxu0 0.0
        %2005 = vmatprep.subr.mxu0 0.0
        %2006 = vmatpush1.msra.mxu0 0.0
        %2007 = vmatprep.subr.mxu0 0.0
        %2008 = vmatpush1.msra.mxu0 0.0
        %2009 = vmatprep.subr.mxu0 0.0
        %2010 = vmatpush1.msra.mxu0 0.0
        %2011 = vmatprep.subr.mxu0 0.0
        %2012 = vmatpush1.msra.mxu0 0.0
        %2013 = vmatprep.subr.mxu0 0.0
        %2014 = vmatpush1.msra.mxu0 0.0
        %2015 = vmatprep.subr.mxu0 0.0
        %2016 = vmatpush1.msra.mxu0 0.0
        %2017 = vmatprep.subr.mxu0 0.0
        %2018 = vmatpush1.msra.mxu0 0.0
        %2019 = vmatprep.subr.mxu0 0.0
        %2020 = vmatpush1.msra.mxu0 0.0
        %2021 = vmatprep.subr.mxu0 0.0
        %2022 = vmatpush1.msra.mxu0 0.0
        %2023 = vmatprep.mubr.f32.mxu0 0.0
        %2024 = vmatmul.mubr.f32.gmra.mrb[0].mxu0 %v1957
        %v2025 = vpop.f32.mrb[0].mxu0
        %v2026 = vadd.f32 0.0, %v2025
        %v2027 = vpop.f32.mrb[0].mxu0
        %v2028 = vadd.f32 0.0, %v2027
        %2029 = vdwg.mxu0
        %v2030 = vadd.f32 %v1939, %v2026
        %v2031 = vadd.f32 %v1940, %v2028
        %v2032 = vld [vmem:[%s5] sm:$0xff]
        %2034 = vset.pattern.permute.xlu0 0
        %2035 = vperm.xlu0 %2034, %v2032
        %v2036 = vpop.permute.xlu0 %2035
        %v2038 = vadd.f32 %v2030, %v2036
        %v2039 = vadd.f32 %v2031, %v2036
        %v2040 = vld [vmem:[%s261] sm:$0xff]
        %v2041 = vld [vmem:[%s261 + $0x8] sm:$0xff]
        %v2042 = vld [vmem:[%s261 + $0x10] sm:$0xff]
        %2046 = vrot.lane.b32.xlu0 %v2040, 111
        %v2047 = vpop.permute.xlu0 %2046
        %2048 = vrot.lane.b32.xlu0 %v2041, 111
        %v2049 = vpop.permute.xlu0 %2048
        %2050 = vrot.lane.b32.xlu0 %v2042, 111
        %v2051 = vpop.permute.xlu0 %2050
        %v2052 = vsel %vm1589, %v2047, %v2049
        %v2053 = vsel %vm1589, %v2049, %v2051
        %v2056 = vadd.f32 %v2038, %v2052
        %v2057 = vadd.f32 %v2039, %v2053
        %2058 = vst [vmem:[%s267] sm:$0xff] %v2056
        %2059 = vst [vmem:[%s267 + $0x8] sm:$0xff] %v2057
      $region56: #{basic_block.1} parent=43 // pred_fallthru
        _
      %s2060 = smul.u32 %s21, %s22
      %p2061 = scmp.lt.s32.totalorder %s2060, 1
      %s2062 = scalar_select %p2061, %s2060, 1
      %s2063 = smul.addr %s2062, 2
      %s2064 = smul.addr %s2063, 8
      %s2065 = scalar_lea.vmem %s6, %s2064
      // Predicated region
      $region61: #{basic_block.1} parent=43 // pred_check
        %p2066 = pneg %p180
      $region62: #{basic_block.1} parent=43 // pred_check_branch
        %2068 = sbr.rel (%p2066) target = $region64
      $region63: #{basic_block.1} parent=43 // pred_region
        %s2069 = smul.u32 %s21, %s22
      $region64: #{basic_block.1} parent=43 // pred_fallthru
        _
    $region44: #{basic_block.1} parent=5 // pred_fallthru
      _
    %p2070 = scmp.le.s32.totalorder 2, %s12
    // Predicated region
    $region65: #{basic_block.1} parent=5 // pred_check
      %p2071 = pneg %p2070
    $region66: #{basic_block.1} parent=5 // pred_check_branch
      %2073 = sbr.rel (%p2071) target = $region68
    $region67: #{basic_block.1} parent=5 // pred_region
      %s2074 = ssub.s32 %s12, 2
      // Predicated region
      $region69: #{basic_block.1} parent=67 // pred_check
        %p2075 = pneg %p186
      $region70: #{basic_block.1} parent=67 // pred_check_branch
        %2077 = sbr.rel (%p2075) target = $region72
      $region71: #{basic_block.1} parent=67 // pred_region
        %s2078 = smul.u32 %s23, %s24
        %p2079 = scmp.lt.s32.totalorder %s2078, 1
        %s2080 = scalar_select %p2079, %s2078, 1
        %s2081 = smul.addr %s2080, 2
        %s2082 = smul.addr %s2081, 8
        %s2083 = scalar_lea.vmem %s6, %s2082
      $region72: #{basic_block.1} parent=67 // pred_fallthru
        _
    $region68: #{basic_block.1} parent=5 // pred_fallthru
      _
  $region6: #{basic_block.1} parent=0 // loop_footer
    %s16 = sadd.s32 1, %s12
  $region7: #{basic_block.1} parent=0 // loop_footer_branch
    %11 = sbr.rel target = $region3
  $region8: #{basic_block.1} parent=0 // loop_exit
    _

</llo_original>
